<compile_context>
chip_gen: v5e
topology: v5e:2x2
jax: 0.10.0
libtpu: 0.0.40
codegen_flags: <defaults>
</compile_context>

<pallas_src>
import functools

import jax
import jax.numpy as jnp
from jax.experimental import pallas as pl
from jax.experimental.pallas import tpu as pltpu


# ---------------------------------------------------------------------------
# Host-side helpers
# ---------------------------------------------------------------------------
def _fold_bn(gamma, beta, mean, var, eps=1e-5):
    scale = gamma / jnp.sqrt(var + eps)
    bias = beta - mean * scale
    return (scale.reshape(1, -1).astype(jnp.float32),
            bias.reshape(1, -1).astype(jnp.float32))


def _pad_up(n, m):
    return ((n + m - 1) // m) * m


def _onchip_bytes(shape, dtype_bytes=4):
    """On-chip footprint: last dim padded to 128 lanes, 2nd-last to 8 sublanes."""
    s = list(shape)
    if len(s) >= 1:
        s[-1] = _pad_up(s[-1], 128)
    if len(s) >= 2:
        s[-2] = _pad_up(s[-2], 8)
    n = 1
    for d in s:
        n *= d
    return n * dtype_bytes


def _vmem_limit(block_bytes, scratch_bytes):
    """2x (double-buffer) on pipelined blocks + scratch + margin, clamped to
    the smallest physical VMEM target (v7x: 64 MiB)."""
    need = 2 * block_bytes + scratch_bytes + (4 << 20)
    return int(min(max(need, 32 << 20), 64 << 20))


# ---------------------------------------------------------------------------
# In-kernel helpers
# ---------------------------------------------------------------------------
def _zero_border(pad_ref, H, W, C, Hp, Wp):
    """Zero only the halo of the (Hp, Wp, C) pad scratch.  Re-runs every grid
    step (each megacore TensorCore owns its own scratch under a "parallel"
    batch axis); the interior is always fully overwritten afterwards."""
    pad_ref[0:1, :, :] = jnp.zeros((1, Wp, C), jnp.float32)
    pad_ref[H + 1:Hp, :, :] = jnp.zeros((Hp - H - 1, Wp, C), jnp.float32)
    pad_ref[:, 0:1, :] = jnp.zeros((Hp, 1, C), jnp.float32)
    pad_ref[:, W + 1:Wp, :] = jnp.zeros((Hp, Wp - W - 1, C), jnp.float32)


def _dw_taps(dw):
    """Extract the 9 (1, 1, C) taps from a (3, 3, C) weight value once
    (hoisted so the per-multiply slice/broadcast is not re-emitted)."""
    return [[dw[dy, dx].reshape(1, 1, -1) for dx in range(3)] for dy in range(3)]


def _dw3x3_s1_from_ref(pad_ref, taps, H, W):
    """Stride-1 depthwise 3x3 reading a zero-haloed (H+2, W+2, C) VMEM ref.

    The three width (sublane) shifts are separate offset loads straight from
    the ref (no value relayout); the 9 height shifts are free leading-dim
    slices of those loaded values."""
    acc = None
    for dx in range(3):
        col = pad_ref[:, dx:dx + W, :]                  # (H+2, W, C)
        for dy in range(3):
            term = col[dy:dy + H] * taps[dy][dx]
            acc = term if acc is None else acc + term
    return acc


def _pw_matmul(t2d, pw_ref):
    """Pointwise 1x1 conv as a single MXU matmul; optional bf16 operands with
    f32 accumulation (native path on v6e/v7x)."""
    lhs = t2d if pw_ref.dtype == jnp.float32 else t2d.astype(pw_ref.dtype)
    return jnp.dot(lhs, pw_ref[...], preferred_element_type=jnp.float32)


# ---------------------------------------------------------------------------
# Kernel for the expand_ratio != 1 branch ("sandglass"):
#   dw3x3*BN1 -> +b1 -> ReLU6 -> fused(pw1,BN2,pw2,BN3) -> ReLU6
#   -> dw3x3*BN4 -> +b4 -> residual add.
# (The reference PyTorch module uses stride 1 for both 3x3 convs in this
#  branch and always adds the identity, regardless of the `stride` argument;
#  we match that verbatim.)
# ---------------------------------------------------------------------------
def _sandglass_kernel(x_ref, dw1_ref, b1_ref, pw_ref, bpw_ref,
                      dw2_ref, b4_ref, o_ref, pad_ref, *, H, W, C):
    Hp, Wp = H + 2, W + 2
    _zero_border(pad_ref, H, W, C, Hp, Wp)

    # Build the 1-px halo in VMEM; only the interior is written.
    pad_ref[1:H + 1, 1:W + 1, :] = x_ref[0]

    # depthwise 3x3 (BN1 scale folded into dw1) + bias + ReLU6
    t = jnp.clip(
        _dw3x3_s1_from_ref(pad_ref, _dw_taps(dw1_ref[...]), H, W) + b1_ref[0],
        0.0, 6.0)

    # fused pointwise: pw-reduce -> BN2 -> pw-expand -> BN3 as one (C, C)
    # matmul.  (H*W, C) merge is a free reshape because W is a multiple of 8;
    # for a non-8-multiple W pad W host-side instead of flattening here.
    t2 = _pw_matmul(t.reshape(H * W, C), pw_ref)
    t3 = jnp.clip(t2 + bpw_ref[...], 0.0, 6.0).reshape(H, W, C)

    # second depthwise 3x3 (BN4 scale folded): reuse the same pad scratch —
    # the halo border is still zero, only the interior store is needed.
    # TODO(synk): replace this round trip with pltpu.roll(+mask) once C is
    # lane-dense (see header).
    pad_ref[1:H + 1, 1:W + 1, :] = t3
    out = _dw3x3_s1_from_ref(pad_ref, _dw_taps(dw2_ref[...]), H, W) + b4_ref[0]

    # residual: re-read the input block (still resident in VMEM) instead of
    # keeping it live across the matmul (cuts vreg pressure / spills).
    o_ref[0] = (x_ref[0] + out).astype(o_ref.dtype)


# ---------------------------------------------------------------------------
# Kernel for the expand_ratio == 1 branch:
#   dw3x3 (stride s) * BN1 -> +b1 -> ReLU6 -> pw1x1 * BN2 -> +b2
# ---------------------------------------------------------------------------
def _dwpw_kernel(x_ref, dw_ref, b1_ref, pw_ref, b2_ref, o_ref, pad_ref,
                 *, H, W, C, Co, Ho, Wo, stride, Hp, Wp):
    _zero_border(pad_ref, H, W, C, Hp, Wp)
    pad_ref[1:H + 1, 1:W + 1, :] = x_ref[0]

    taps = _dw_taps(dw_ref[...])
    if stride == 1:
        acc = _dw3x3_s1_from_ref(pad_ref, taps, H, W)
    else:
        # stride 2: three W-strided ref loads (instead of 9 strided sublane
        # gathers), then row decimation via a free leading-dim split.
        acc = None
        for dx in range(3):
            col = pad_ref[:, pl.ds(dx, Wo, 2), :]          # (Hp, Wo, C)
            cr = col.reshape(Hp // 2, 2, Wo, C)            # leading-dim split
            rows = (cr[0:Ho, 0], cr[0:Ho, 1], cr[1:Ho + 1, 0])
            for dy in range(3):
                term = rows[dy] * taps[dy][dx]
                acc = term if acc is None else acc + term

    t = jnp.clip(acc + b1_ref[0], 0.0, 6.0)                # +bias, ReLU6
    y = _pw_matmul(t.reshape(Ho * Wo, C), pw_ref)
    o_ref[0] = (y + b2_ref[...]).reshape(Ho, Wo, Co).astype(o_ref.dtype)


# ---------------------------------------------------------------------------
# Module wrapper
# ---------------------------------------------------------------------------
class InvertedResidualV2:
    """JAX/Pallas port of mobilenext InvertedResidualV2 (inference mode)."""

    def __init__(self, inp, oup, stride, expand_ratio, *, key, use_bf16=False):
        assert stride in (1, 2)
        self.inp, self.oup, self.stride = inp, oup, stride
        self.expand_ratio = expand_ratio
        self._pw_dtype = jnp.bfloat16 if use_bf16 else jnp.float32
        keys = iter(jax.random.split(key, 64))

        def conv(shape, fan_in):
            return (jax.random.normal(next(keys), shape, jnp.float32)
                    * (2.0 / fan_in) ** 0.5)

        def bn(c):
            gamma = jax.random.uniform(next(keys), (c,), jnp.float32, 0.5, 1.5)
            beta = jax.random.normal(next(keys), (c,), jnp.float32) * 0.1
            mean = jax.random.normal(next(keys), (c,), jnp.float32) * 0.1
            var = jax.random.uniform(next(keys), (c,), jnp.float32, 0.5, 1.5)
            return _fold_bn(gamma, beta, mean, var)

        # TODO(synk): for production channel counts (96/144/...), zero-pad
        # C/Co to a multiple of 128 here (weights + biases) for lane-dense
        # stores; intentionally NOT done for the tiny test channels.
        if expand_ratio == 1:
            hidden = round(inp * expand_ratio)           # == inp
            self.dw_w = conv((3, 3, hidden), 9)          # depthwise 3x3
            self.bn1 = bn(hidden)
            self.pw_w = conv((hidden, oup), hidden)      # 1x1 conv (in, out)
            self.bn2 = bn(oup)
            s1, b1 = self.bn1
            s2, b2 = self.bn2
            self._dwf = self.dw_w * s1                   # (3, 3, C)
            self._b1 = b1                                # (1, C)
            self._pwf = (self.pw_w * s2).astype(self._pw_dtype)   # (C, Co)
            self._b2 = b2                                # (1, Co)
        else:
            # PyTorch uses Conv2d(inp, inp, 3, groups=oup); that is a pure
            # depthwise conv when inp == oup (the MobileNeXt configuration).
            assert inp == oup, "only depthwise grouped conv (inp == oup) supported"
            hidden = inp // expand_ratio
            self.hidden = hidden
            self.dw1_w = conv((3, 3, inp), 9)
            self.bn1 = bn(inp)
            self.pw1_w = conv((inp, hidden), inp)
            self.bn2 = bn(hidden)
            self.pw2_w = conv((hidden, inp), hidden)
            self.bn3 = bn(inp)
            self.dw2_w = conv((3, 3, inp), 9)
            self.bn4 = bn(inp)
            s1, b1 = self.bn1
            s2, b2 = self.bn2
            s3, b3 = self.bn3
            s4, b4 = self.bn4
            self._dw1f = self.dw1_w * s1                 # (3, 3, C)
            self._b1 = b1                                # (1, C)
            self._dw2f = self.dw2_w * s4                 # (3, 3, C)
            self._b4 = b4                                # (1, C)
            # pw-reduce -> BN2 -> pw-expand -> BN3 collapse into one matmul
            self._pwf = (((self.pw1_w * s2) @ self.pw2_w) * s3).astype(self._pw_dtype)
            self._bpw = (b2 @ self.pw2_w) * s3 + b3      # (1, C)

    # -------------------------- public forward ---------------------------
    def __call__(self, x_nchw):
        x = jnp.transpose(x_nchw, (0, 2, 3, 1)).astype(jnp.float32)  # NHWC
        return jnp.transpose(self.forward_nhwc(x), (0, 3, 1, 2))     # NCHW

    def forward_nhwc(self, x):
        if self.expand_ratio == 1:
            return self._dwpw(x)
        return self._sandglass(x)

    # ----------------------- pallas_call wrappers ------------------------
    # TODO(synk): add H-row tiling (grid=(N, cdiv(H, TH)) with a 1-row halo)
    # for production 112x112 stages so blocks fit v7x's 64 MiB VMEM and both
    # TensorCores stay busy at batch 1.
    def _sandglass(self, x):
        N, H, W, C = x.shape
        full = lambda a: pl.BlockSpec(a.shape, lambda n: (0,) * a.ndim)
        kernel = functools.partial(_sandglass_kernel, H=H, W=W, C=C)
        block_bytes = 2 * _onchip_bytes((H, W, C))               # in + out
        scratch_bytes = _onchip_bytes((H + 2, W + 2, C))
        flops = N * (2 * 2 * 9 * H * W * C + 2 * H * W * C * C)
        bytes_accessed = 4 * (2 * N * H * W * C + 18 * C + C * C + 3 * C)
        return pl.pallas_call(
            kernel,
            out_shape=jax.ShapeDtypeStruct((N, H, W, C), x.dtype),
            grid=(N,),
            in_specs=[
                pl.BlockSpec((1, H, W, C), lambda n: (n, 0, 0, 0)),
                full(self._dw1f), full(self._b1),
                full(self._pwf), full(self._bpw),
                full(self._dw2f), full(self._b4),
            ],
            out_specs=pl.BlockSpec((1, H, W, C), lambda n: (n, 0, 0, 0)),
            scratch_shapes=[pltpu.VMEM((H + 2, W + 2, C), jnp.float32)],
            compiler_params=pltpu.CompilerParams(
                dimension_semantics=("parallel",),
                vmem_limit_bytes=_vmem_limit(block_bytes, scratch_bytes)),
            cost_estimate=pl.CostEstimate(
                flops=flops, transcendentals=0, bytes_accessed=bytes_accessed),
        )(x, self._dw1f, self._b1, self._pwf, self._bpw, self._dw2f, self._b4)

    def _dwpw(self, x):
        N, H, W, C = x.shape
        s = self.stride
        Ho = (H - 1) // s + 1
        Wo = (W - 1) // s + 1
        Co = self.oup
        Hp, Wp = H + 2, W + 2
        if s == 2:                       # even dims for the reshape decimation
            Hp += Hp % 2
            Wp += Wp % 2
        full = lambda a: pl.BlockSpec(a.shape, lambda n: (0,) * a.ndim)
        kernel = functools.partial(_dwpw_kernel, H=H, W=W, C=C, Co=Co,
                                   Ho=Ho, Wo=Wo, stride=s, Hp=Hp, Wp=Wp)
        block_bytes = _onchip_bytes((H, W, C)) + _onchip_bytes((Ho, Wo, Co))
        scratch_bytes = _onchip_bytes((Hp, Wp, C))
        flops = N * (2 * 9 * Ho * Wo * C + 2 * Ho * Wo * C * Co)
        bytes_accessed = 4 * (N * H * W * C + N * Ho * Wo * Co
                              + 9 * C + C * Co + C + Co)
        return pl.pallas_call(
            kernel,
            out_shape=jax.ShapeDtypeStruct((N, Ho, Wo, Co), x.dtype),
            grid=(N,),
            in_specs=[
                pl.BlockSpec((1, H, W, C), lambda n: (n, 0, 0, 0)),
                full(self._dwf), full(self._b1),
                full(self._pwf), full(self._b2),
            ],
            out_specs=pl.BlockSpec((1, Ho, Wo, Co), lambda n: (n, 0, 0, 0)),
            scratch_shapes=[pltpu.VMEM((Hp, Wp, C), jnp.float32)],
            compiler_params=pltpu.CompilerParams(
                dimension_semantics=("parallel",),
                vmem_limit_bytes=_vmem_limit(block_bytes, scratch_bytes)),
            cost_estimate=pl.CostEstimate(
                flops=flops, transcendentals=0, bytes_accessed=bytes_accessed),
        )(x, self._dwf, self._b1, self._pwf, self._b2)


# ------------------------ pure-JAX references -----------------------------
def _dw_conv_ref(x, w, stride):
    C = x.shape[-1]
    return jax.lax.conv_general_dilated(
        x, w[:, :, None, :], window_strides=(stride, stride),
        padding=((1, 1), (1, 1)),
        dimension_numbers=("NHWC", "HWIO", "NHWC"),
        feature_group_count=C)


def _bn_ref(t, sb):
    s, b = sb
    return t * s.reshape(1, 1, 1, -1) + b.reshape(1, 1, 1, -1)


def _sandglass_ref(m, x_nchw):
    x = jnp.transpose(x_nchw, (0, 2, 3, 1)).astype(jnp.float32)
    t = jnp.clip(_bn_ref(_dw_conv_ref(x, m.dw1_w, 1), m.bn1), 0.0, 6.0)
    t = _bn_ref(jnp.einsum("nhwc,cd->nhwd", t, m.pw1_w), m.bn2)
    t = jnp.clip(_bn_ref(jnp.einsum("nhwc,cd->nhwd", t, m.pw2_w), m.bn3),
                 0.0, 6.0)
    t = _bn_ref(_dw_conv_ref(t, m.dw2_w, 1), m.bn4)
    return jnp.transpose(x + t, (0, 3, 1, 2))


def _dwpw_ref(m, x_nchw):
    x = jnp.transpose(x_nchw, (0, 2, 3, 1)).astype(jnp.float32)
    t = jnp.clip(_bn_ref(_dw_conv_ref(x, m.dw_w, m.stride), m.bn1), 0.0, 6.0)
    t = _bn_ref(jnp.einsum("nhwc,cd->nhwd", t, m.pw_w), m.bn2)
    return jnp.transpose(t, (0, 3, 1, 2))


if __name__ == "__main__":
    key = jax.random.PRNGKey(0)
    k_x1, k_m1, k_x2, k_m2, k_x3, k_m3 = jax.random.split(key, 6)

    # Case 1: expand_ratio != 1 (sandglass block, residual add). NCHW input.
    x1 = jax.random.normal(k_x1, (2, 16, 16, 16), jnp.float32)   # N, C, H, W
    m1 = InvertedResidualV2(inp=16, oup=16, stride=1, expand_ratio=2, key=k_m1)
    y1 = jax.block_until_ready(m1(x1))
    r1 = _sandglass_ref(m1, x1)
    assert y1.shape == (2, 16, 16, 16)
    assert jnp.allclose(y1, r1, rtol=1e-4, atol=1e-4), "sandglass mismatch"

    # Case 1b: same block, bf16 MXU path for the fused pointwise (v6e/v7x).
    m1b = InvertedResidualV2(inp=16, oup=16, stride=1, expand_ratio=2,
                             key=k_m1, use_bf16=True)
    y1b = jax.block_until_ready(m1b(x1))
    assert jnp.allclose(y1b, r1, rtol=1e-1, atol=1e-1), "bf16 sandglass mismatch"

    # Case 2: expand_ratio == 1 (dw3x3 + pw1x1, no residual), stride=1.
    x2 = jax.random.normal(k_x2, (2, 8, 16, 16), jnp.float32)    # N, C, H, W
    m2 = InvertedResidualV2(inp=8, oup=24, stride=1, expand_ratio=1, key=k_m2)
    y2 = jax.block_until_ready(m2(x2))
    r2 = _dwpw_ref(m2, x2)
    assert y2.shape == (2, 24, 16, 16)
    assert jnp.allclose(y2, r2, rtol=1e-4, atol=1e-4), "dw+pw mismatch"

    # Case 3: expand_ratio == 1, stride=2 (strided-W loads + row decimation).
    x3 = jax.random.normal(k_x3, (2, 8, 16, 16), jnp.float32)    # N, C, H, W
    m3 = InvertedResidualV2(inp=8, oup=16, stride=2, expand_ratio=1, key=k_m3)
    y3 = jax.block_until_ready(m3(x3))
    r3 = _dwpw_ref(m3, x3)
    assert y3.shape == (2, 16, 8, 8)
    assert jnp.allclose(y3, r3, rtol=1e-4, atol=1e-4), "dw+pw stride-2 mismatch"

    print("KERNEL_OK")
</pallas_src>

<mosaic_0001>
module attributes {stable_mosaic.version = 11 : i64} {
  func.func @_sandglass_kernel(%arg0: i32, %arg1: memref<1x16x16x16xf32, #tpu.memory_space<vmem>>, %arg2: memref<3x3x16xf32, #tpu.memory_space<vmem>>, %arg3: memref<1x16xf32, #tpu.memory_space<vmem>>, %arg4: memref<16x16xf32, #tpu.memory_space<vmem>>, %arg5: memref<1x16xf32, #tpu.memory_space<vmem>>, %arg6: memref<3x3x16xf32, #tpu.memory_space<vmem>>, %arg7: memref<1x16xf32, #tpu.memory_space<vmem>>, %arg8: memref<1x16x16x16xf32, #tpu.memory_space<vmem>>, %arg9: memref<18x18x16xf32, #tpu.memory_space<vmem>>) attributes {dimension_semantics = [#tpu.dimension_semantics<parallel>], iteration_bounds = array<i64: 2>, scalar_prefetch = 0 : i64, scratch_operands = 1 : i64, tpu.core_type = #tpu.core_type<tc>, window_params = [{transform_indices = @transform_0, window_bounds = array<i64: 1, 16, 16, 16>}, {pipeline_mode = #tpu.pipeline_mode<synchronous>, transform_indices = @transform_1, window_bounds = array<i64: 3, 3, 16>}, {pipeline_mode = #tpu.pipeline_mode<synchronous>, transform_indices = @transform_2, window_bounds = array<i64: 1, 16>}, {pipeline_mode = #tpu.pipeline_mode<synchronous>, transform_indices = @transform_3, window_bounds = array<i64: 16, 16>}, {pipeline_mode = #tpu.pipeline_mode<synchronous>, transform_indices = @transform_4, window_bounds = array<i64: 1, 16>}, {pipeline_mode = #tpu.pipeline_mode<synchronous>, transform_indices = @transform_5, window_bounds = array<i64: 3, 3, 16>}, {pipeline_mode = #tpu.pipeline_mode<synchronous>, transform_indices = @transform_6, window_bounds = array<i64: 1, 16>}, {transform_indices = @transform_7, window_bounds = array<i64: 1, 16, 16, 16>}]} {
    %cst = arith.constant 0.000000e+00 : f32
    %0 = vector.broadcast %cst : f32 to vector<1x18x16xf32>
    %c0 = arith.constant 0 : index
    %c0_0 = arith.constant 0 : index
    %c0_1 = arith.constant 0 : index
    %1 = vector.load %arg9[%c0, %c0_0, %c0_1] : memref<18x18x16xf32, #tpu.memory_space<vmem>>, vector<1x18x16xf32>
    tpu.vector_store %arg9[%c0, %c0_0, %c0_1], %0 {strides = array<i32>} : memref<18x18x16xf32, #tpu.memory_space<vmem>>, vector<1x18x16xf32>,
    %cst_2 = arith.constant 0.000000e+00 : f32
    %2 = vector.broadcast %cst_2 : f32 to vector<1x18x16xf32>
    %c17 = arith.constant 17 : index
    %c0_3 = arith.constant 0 : index
    %c0_4 = arith.constant 0 : index
    %3 = vector.load %arg9[%c17, %c0_3, %c0_4] : memref<18x18x16xf32, #tpu.memory_space<vmem>>, vector<1x18x16xf32>
    tpu.vector_store %arg9[%c17, %c0_3, %c0_4], %2 {strides = array<i32>} : memref<18x18x16xf32, #tpu.memory_space<vmem>>, vector<1x18x16xf32>,
    %cst_5 = arith.constant 0.000000e+00 : f32
    %4 = vector.broadcast %cst_5 : f32 to vector<18x1x16xf32>
    %c0_6 = arith.constant 0 : index
    %c0_7 = arith.constant 0 : index
    %c0_8 = arith.constant 0 : index
    %5 = vector.load %arg9[%c0_6, %c0_7, %c0_8] : memref<18x18x16xf32, #tpu.memory_space<vmem>>, vector<18x1x16xf32>
    tpu.vector_store %arg9[%c0_6, %c0_7, %c0_8], %4 {strides = array<i32>} : memref<18x18x16xf32, #tpu.memory_space<vmem>>, vector<18x1x16xf32>,
    %cst_9 = arith.constant 0.000000e+00 : f32
    %6 = vector.broadcast %cst_9 : f32 to vector<18x1x16xf32>
    %c0_10 = arith.constant 0 : index
    %c17_11 = arith.constant 17 : index
    %c0_12 = arith.constant 0 : index
    %7 = vector.load %arg9[%c0_10, %c17_11, %c0_12] : memref<18x18x16xf32, #tpu.memory_space<vmem>>, vector<18x1x16xf32>
    tpu.vector_store %arg9[%c0_10, %c17_11, %c0_12], %6 {strides = array<i32>} : memref<18x18x16xf32, #tpu.memory_space<vmem>>, vector<18x1x16xf32>,
    %c0_13 = arith.constant 0 : index
    %c0_14 = arith.constant 0 : index
    %c0_15 = arith.constant 0 : index
    %c0_16 = arith.constant 0 : index
    %8 = vector.load %arg1[%c0_13, %c0_14, %c0_15, %c0_16] : memref<1x16x16x16xf32, #tpu.memory_space<vmem>>, vector<1x16x16x16xf32>
    %9 = vector.shape_cast %8 : vector<1x16x16x16xf32> to vector<16x16x16xf32>
    %c1 = arith.constant 1 : index
    %c1_17 = arith.constant 1 : index
    %c0_18 = arith.constant 0 : index
    %10 = vector.load %arg9[%c1, %c1_17, %c0_18] : memref<18x18x16xf32, #tpu.memory_space<vmem>>, vector<16x16x16xf32>
    tpu.vector_store %arg9[%c1, %c1_17, %c0_18], %9 {strides = array<i32>} : memref<18x18x16xf32, #tpu.memory_space<vmem>>, vector<16x16x16xf32>,
    %c0_19 = arith.constant 0 : index
    %c0_20 = arith.constant 0 : index
    %c0_21 = arith.constant 0 : index
    %11 = vector.load %arg2[%c0_19, %c0_20, %c0_21] : memref<3x3x16xf32, #tpu.memory_space<vmem>>, vector<3x3x16xf32>
    %12 = vector.extract_strided_slice %11 {offsets = [0, 0, 0], sizes = [1, 1, 16], strides = [1, 1, 1]} : vector<3x3x16xf32> to vector<1x1x16xf32>
    %13 = vector.shape_cast %12 : vector<1x1x16xf32> to vector<16xf32>
    %14 = vector.shape_cast %13 : vector<16xf32> to vector<1x1x16xf32>
    %15 = vector.extract_strided_slice %11 {offsets = [0, 1, 0], sizes = [1, 1, 16], strides = [1, 1, 1]} : vector<3x3x16xf32> to vector<1x1x16xf32>
    %16 = vector.shape_cast %15 : vector<1x1x16xf32> to vector<16xf32>
    %17 = vector.shape_cast %16 : vector<16xf32> to vector<1x1x16xf32>
    %18 = vector.extract_strided_slice %11 {offsets = [0, 2, 0], sizes = [1, 1, 16], strides = [1, 1, 1]} : vector<3x3x16xf32> to vector<1x1x16xf32>
    %19 = vector.shape_cast %18 : vector<1x1x16xf32> to vector<16xf32>
    %20 = vector.shape_cast %19 : vector<16xf32> to vector<1x1x16xf32>
    %21 = vector.extract_strided_slice %11 {offsets = [1, 0, 0], sizes = [1, 1, 16], strides = [1, 1, 1]} : vector<3x3x16xf32> to vector<1x1x16xf32>
    %22 = vector.shape_cast %21 : vector<1x1x16xf32> to vector<16xf32>
    %23 = vector.shape_cast %22 : vector<16xf32> to vector<1x1x16xf32>
    %24 = vector.extract_strided_slice %11 {offsets = [1, 1, 0], sizes = [1, 1, 16], strides = [1, 1, 1]} : vector<3x3x16xf32> to vector<1x1x16xf32>
    %25 = vector.shape_cast %24 : vector<1x1x16xf32> to vector<16xf32>
    %26 = vector.shape_cast %25 : vector<16xf32> to vector<1x1x16xf32>
    %27 = vector.extract_strided_slice %11 {offsets = [1, 2, 0], sizes = [1, 1, 16], strides = [1, 1, 1]} : vector<3x3x16xf32> to vector<1x1x16xf32>
    %28 = vector.shape_cast %27 : vector<1x1x16xf32> to vector<16xf32>
    %29 = vector.shape_cast %28 : vector<16xf32> to vector<1x1x16xf32>
    %30 = vector.extract_strided_slice %11 {offsets = [2, 0, 0], sizes = [1, 1, 16], strides = [1, 1, 1]} : vector<3x3x16xf32> to vector<1x1x16xf32>
    %31 = vector.shape_cast %30 : vector<1x1x16xf32> to vector<16xf32>
    %32 = vector.shape_cast %31 : vector<16xf32> to vector<1x1x16xf32>
    %33 = vector.extract_strided_slice %11 {offsets = [2, 1, 0], sizes = [1, 1, 16], strides = [1, 1, 1]} : vector<3x3x16xf32> to vector<1x1x16xf32>
    %34 = vector.shape_cast %33 : vector<1x1x16xf32> to vector<16xf32>
    %35 = vector.shape_cast %34 : vector<16xf32> to vector<1x1x16xf32>
    %36 = vector.extract_strided_slice %11 {offsets = [2, 2, 0], sizes = [1, 1, 16], strides = [1, 1, 1]} : vector<3x3x16xf32> to vector<1x1x16xf32>
    %37 = vector.shape_cast %36 : vector<1x1x16xf32> to vector<16xf32>
    %38 = vector.shape_cast %37 : vector<16xf32> to vector<1x1x16xf32>
    %c0_22 = arith.constant 0 : index
    %c0_23 = arith.constant 0 : index
    %c0_24 = arith.constant 0 : index
    %39 = vector.load %arg9[%c0_22, %c0_23, %c0_24] : memref<18x18x16xf32, #tpu.memory_space<vmem>>, vector<18x16x16xf32>
    %40 = vector.extract_strided_slice %39 {offsets = [0, 0, 0], sizes = [16, 16, 16], strides = [1, 1, 1]} : vector<18x16x16xf32> to vector<16x16x16xf32>
    %41 = vector.broadcast %14 : vector<1x1x16xf32> to vector<16x16x16xf32>
    %42 = arith.mulf %40, %41 : vector<16x16x16xf32>
    %43 = vector.extract_strided_slice %39 {offsets = [1, 0, 0], sizes = [16, 16, 16], strides = [1, 1, 1]} : vector<18x16x16xf32> to vector<16x16x16xf32>
    %44 = vector.broadcast %23 : vector<1x1x16xf32> to vector<16x16x16xf32>
    %45 = arith.mulf %43, %44 : vector<16x16x16xf32>
    %46 = arith.addf %42, %45 : vector<16x16x16xf32>
    %47 = vector.extract_strided_slice %39 {offsets = [2, 0, 0], sizes = [16, 16, 16], strides = [1, 1, 1]} : vector<18x16x16xf32> to vector<16x16x16xf32>
    %48 = vector.broadcast %32 : vector<1x1x16xf32> to vector<16x16x16xf32>
    %49 = arith.mulf %47, %48 : vector<16x16x16xf32>
    %50 = arith.addf %46, %49 : vector<16x16x16xf32>
    %c0_25 = arith.constant 0 : index
    %c1_26 = arith.constant 1 : index
    %c0_27 = arith.constant 0 : index
    %51 = vector.load %arg9[%c0_25, %c1_26, %c0_27] : memref<18x18x16xf32, #tpu.memory_space<vmem>>, vector<18x16x16xf32>
    %52 = vector.extract_strided_slice %51 {offsets = [0, 0, 0], sizes = [16, 16, 16], strides = [1, 1, 1]} : vector<18x16x16xf32> to vector<16x16x16xf32>
    %53 = vector.broadcast %17 : vector<1x1x16xf32> to vector<16x16x16xf32>
    %54 = arith.mulf %52, %53 : vector<16x16x16xf32>
    %55 = arith.addf %50, %54 : vector<16x16x16xf32>
    %56 = vector.extract_strided_slice %51 {offsets = [1, 0, 0], sizes = [16, 16, 16], strides = [1, 1, 1]} : vector<18x16x16xf32> to vector<16x16x16xf32>
    %57 = vector.broadcast %26 : vector<1x1x16xf32> to vector<16x16x16xf32>
    %58 = arith.mulf %56, %57 : vector<16x16x16xf32>
    %59 = arith.addf %55, %58 : vector<16x16x16xf32>
    %60 = vector.extract_strided_slice %51 {offsets = [2, 0, 0], sizes = [16, 16, 16], strides = [1, 1, 1]} : vector<18x16x16xf32> to vector<16x16x16xf32>
    %61 = vector.broadcast %35 : vector<1x1x16xf32> to vector<16x16x16xf32>
    %62 = arith.mulf %60, %61 : vector<16x16x16xf32>
    %63 = arith.addf %59, %62 : vector<16x16x16xf32>
    %c0_28 = arith.constant 0 : index
    %c2 = arith.constant 2 : index
    %c0_29 = arith.constant 0 : index
    %64 = vector.load %arg9[%c0_28, %c2, %c0_29] : memref<18x18x16xf32, #tpu.memory_space<vmem>>, vector<18x16x16xf32>
    %65 = vector.extract_strided_slice %64 {offsets = [0, 0, 0], sizes = [16, 16, 16], strides = [1, 1, 1]} : vector<18x16x16xf32> to vector<16x16x16xf32>
    %66 = vector.broadcast %20 : vector<1x1x16xf32> to vector<16x16x16xf32>
    %67 = arith.mulf %65, %66 : vector<16x16x16xf32>
    %68 = arith.addf %63, %67 : vector<16x16x16xf32>
    %69 = vector.extract_strided_slice %64 {offsets = [1, 0, 0], sizes = [16, 16, 16], strides = [1, 1, 1]} : vector<18x16x16xf32> to vector<16x16x16xf32>
    %70 = vector.broadcast %29 : vector<1x1x16xf32> to vector<16x16x16xf32>
    %71 = arith.mulf %69, %70 : vector<16x16x16xf32>
    %72 = arith.addf %68, %71 : vector<16x16x16xf32>
    %73 = vector.extract_strided_slice %64 {offsets = [2, 0, 0], sizes = [16, 16, 16], strides = [1, 1, 1]} : vector<18x16x16xf32> to vector<16x16x16xf32>
    %74 = vector.broadcast %38 : vector<1x1x16xf32> to vector<16x16x16xf32>
    %75 = arith.mulf %73, %74 : vector<16x16x16xf32>
    %76 = arith.addf %72, %75 : vector<16x16x16xf32>
    %c0_30 = arith.constant 0 : index
    %c0_31 = arith.constant 0 : index
    %77 = vector.load %arg3[%c0_30, %c0_31] : memref<1x16xf32, #tpu.memory_space<vmem>>, vector<1x16xf32>
    %78 = vector.shape_cast %77 : vector<1x16xf32> to vector<16xf32>
    %79 = vector.shape_cast %78 : vector<16xf32> to vector<1x1x16xf32>
    %80 = vector.broadcast %79 : vector<1x1x16xf32> to vector<16x16x16xf32>
    %81 = arith.addf %76, %80 : vector<16x16x16xf32>
    %cst_32 = arith.constant 0.000000e+00 : f32
    %cst_33 = arith.constant 6.000000e+00 : f32
    %82 = vector.broadcast %cst_32 : f32 to vector<16x16x16xf32>
    %83 = arith.maximumf %82, %81 : vector<16x16x16xf32>
    %84 = vector.broadcast %cst_33 : f32 to vector<16x16x16xf32>
    %85 = arith.minimumf %84, %83 : vector<16x16x16xf32>
    %86 = vector.shape_cast %85 : vector<16x16x16xf32> to vector<256x16xf32>
    %c0_34 = arith.constant 0 : index
    %c0_35 = arith.constant 0 : index
    %87 = vector.load %arg4[%c0_34, %c0_35] : memref<16x16xf32, #tpu.memory_space<vmem>>, vector<16x16xf32>
    %cst_36 = arith.constant dense<0.000000e+00> : vector<256x16xf32>
    %88 = tpu.matmul %86, %87, %cst_36 {dimension_numbers = #tpu.dot_dimension_numbers<[1], [0], [0], [1], [0, 0, 1, 1], [], []>} : vector<256x16xf32>, vector<16x16xf32>, vector<256x16xf32> -> vector<256x16xf32>
    %c0_37 = arith.constant 0 : index
    %c0_38 = arith.constant 0 : index
    %89 = vector.load %arg5[%c0_37, %c0_38] : memref<1x16xf32, #tpu.memory_space<vmem>>, vector<1x16xf32>
    %90 = vector.broadcast %89 : vector<1x16xf32> to vector<256x16xf32>
    %91 = arith.addf %88, %90 : vector<256x16xf32>
    %cst_39 = arith.constant 0.000000e+00 : f32
    %cst_40 = arith.constant 6.000000e+00 : f32
    %92 = vector.broadcast %cst_39 : f32 to vector<256x16xf32>
    %93 = arith.maximumf %92, %91 : vector<256x16xf32>
    %94 = vector.broadcast %cst_40 : f32 to vector<256x16xf32>
    %95 = arith.minimumf %94, %93 : vector<256x16xf32>
    %96 = vector.shape_cast %95 : vector<256x16xf32> to vector<16x16x16xf32>
    %c1_41 = arith.constant 1 : index
    %c1_42 = arith.constant 1 : index
    %c0_43 = arith.constant 0 : index
    %97 = vector.load %arg9[%c1_41, %c1_42, %c0_43] : memref<18x18x16xf32, #tpu.memory_space<vmem>>, vector<16x16x16xf32>
    tpu.vector_store %arg9[%c1_41, %c1_42, %c0_43], %96 {strides = array<i32>} : memref<18x18x16xf32, #tpu.memory_space<vmem>>, vector<16x16x16xf32>,
    %c0_44 = arith.constant 0 : index
    %c0_45 = arith.constant 0 : index
    %c0_46 = arith.constant 0 : index
    %98 = vector.load %arg6[%c0_44, %c0_45, %c0_46] : memref<3x3x16xf32, #tpu.memory_space<vmem>>, vector<3x3x16xf32>
    %99 = vector.extract_strided_slice %98 {offsets = [0, 0, 0], sizes = [1, 1, 16], strides = [1, 1, 1]} : vector<3x3x16xf32> to vector<1x1x16xf32>
    %100 = vector.shape_cast %99 : vector<1x1x16xf32> to vector<16xf32>
    %101 = vector.shape_cast %100 : vector<16xf32> to vector<1x1x16xf32>
    %102 = vector.extract_strided_slice %98 {offsets = [0, 1, 0], sizes = [1, 1, 16], strides = [1, 1, 1]} : vector<3x3x16xf32> to vector<1x1x16xf32>
    %103 = vector.shape_cast %102 : vector<1x1x16xf32> to vector<16xf32>
    %104 = vector.shape_cast %103 : vector<16xf32> to vector<1x1x16xf32>
    %105 = vector.extract_strided_slice %98 {offsets = [0, 2, 0], sizes = [1, 1, 16], strides = [1, 1, 1]} : vector<3x3x16xf32> to vector<1x1x16xf32>
    %106 = vector.shape_cast %105 : vector<1x1x16xf32> to vector<16xf32>
    %107 = vector.shape_cast %106 : vector<16xf32> to vector<1x1x16xf32>
    %108 = vector.extract_strided_slice %98 {offsets = [1, 0, 0], sizes = [1, 1, 16], strides = [1, 1, 1]} : vector<3x3x16xf32> to vector<1x1x16xf32>
    %109 = vector.shape_cast %108 : vector<1x1x16xf32> to vector<16xf32>
    %110 = vector.shape_cast %109 : vector<16xf32> to vector<1x1x16xf32>
    %111 = vector.extract_strided_slice %98 {offsets = [1, 1, 0], sizes = [1, 1, 16], strides = [1, 1, 1]} : vector<3x3x16xf32> to vector<1x1x16xf32>
    %112 = vector.shape_cast %111 : vector<1x1x16xf32> to vector<16xf32>
    %113 = vector.shape_cast %112 : vector<16xf32> to vector<1x1x16xf32>
    %114 = vector.extract_strided_slice %98 {offsets = [1, 2, 0], sizes = [1, 1, 16], strides = [1, 1, 1]} : vector<3x3x16xf32> to vector<1x1x16xf32>
    %115 = vector.shape_cast %114 : vector<1x1x16xf32> to vector<16xf32>
    %116 = vector.shape_cast %115 : vector<16xf32> to vector<1x1x16xf32>
    %117 = vector.extract_strided_slice %98 {offsets = [2, 0, 0], sizes = [1, 1, 16], strides = [1, 1, 1]} : vector<3x3x16xf32> to vector<1x1x16xf32>
    %118 = vector.shape_cast %117 : vector<1x1x16xf32> to vector<16xf32>
    %119 = vector.shape_cast %118 : vector<16xf32> to vector<1x1x16xf32>
    %120 = vector.extract_strided_slice %98 {offsets = [2, 1, 0], sizes = [1, 1, 16], strides = [1, 1, 1]} : vector<3x3x16xf32> to vector<1x1x16xf32>
    %121 = vector.shape_cast %120 : vector<1x1x16xf32> to vector<16xf32>
    %122 = vector.shape_cast %121 : vector<16xf32> to vector<1x1x16xf32>
    %123 = vector.extract_strided_slice %98 {offsets = [2, 2, 0], sizes = [1, 1, 16], strides = [1, 1, 1]} : vector<3x3x16xf32> to vector<1x1x16xf32>
    %124 = vector.shape_cast %123 : vector<1x1x16xf32> to vector<16xf32>
    %125 = vector.shape_cast %124 : vector<16xf32> to vector<1x1x16xf32>
    %c0_47 = arith.constant 0 : index
    %c0_48 = arith.constant 0 : index
    %c0_49 = arith.constant 0 : index
    %126 = vector.load %arg9[%c0_47, %c0_48, %c0_49] : memref<18x18x16xf32, #tpu.memory_space<vmem>>, vector<18x16x16xf32>
    %127 = vector.extract_strided_slice %126 {offsets = [0, 0, 0], sizes = [16, 16, 16], strides = [1, 1, 1]} : vector<18x16x16xf32> to vector<16x16x16xf32>
    %128 = vector.broadcast %101 : vector<1x1x16xf32> to vector<16x16x16xf32>
    %129 = arith.mulf %127, %128 : vector<16x16x16xf32>
    %130 = vector.extract_strided_slice %126 {offsets = [1, 0, 0], sizes = [16, 16, 16], strides = [1, 1, 1]} : vector<18x16x16xf32> to vector<16x16x16xf32>
    %131 = vector.broadcast %110 : vector<1x1x16xf32> to vector<16x16x16xf32>
    %132 = arith.mulf %130, %131 : vector<16x16x16xf32>
    %133 = arith.addf %129, %132 : vector<16x16x16xf32>
    %134 = vector.extract_strided_slice %126 {offsets = [2, 0, 0], sizes = [16, 16, 16], strides = [1, 1, 1]} : vector<18x16x16xf32> to vector<16x16x16xf32>
    %135 = vector.broadcast %119 : vector<1x1x16xf32> to vector<16x16x16xf32>
    %136 = arith.mulf %134, %135 : vector<16x16x16xf32>
    %137 = arith.addf %133, %136 : vector<16x16x16xf32>
    %c0_50 = arith.constant 0 : index
    %c1_51 = arith.constant 1 : index
    %c0_52 = arith.constant 0 : index
    %138 = vector.load %arg9[%c0_50, %c1_51, %c0_52] : memref<18x18x16xf32, #tpu.memory_space<vmem>>, vector<18x16x16xf32>
    %139 = vector.extract_strided_slice %138 {offsets = [0, 0, 0], sizes = [16, 16, 16], strides = [1, 1, 1]} : vector<18x16x16xf32> to vector<16x16x16xf32>
    %140 = vector.broadcast %104 : vector<1x1x16xf32> to vector<16x16x16xf32>
    %141 = arith.mulf %139, %140 : vector<16x16x16xf32>
    %142 = arith.addf %137, %141 : vector<16x16x16xf32>
    %143 = vector.extract_strided_slice %138 {offsets = [1, 0, 0], sizes = [16, 16, 16], strides = [1, 1, 1]} : vector<18x16x16xf32> to vector<16x16x16xf32>
    %144 = vector.broadcast %113 : vector<1x1x16xf32> to vector<16x16x16xf32>
    %145 = arith.mulf %143, %144 : vector<16x16x16xf32>
    %146 = arith.addf %142, %145 : vector<16x16x16xf32>
    %147 = vector.extract_strided_slice %138 {offsets = [2, 0, 0], sizes = [16, 16, 16], strides = [1, 1, 1]} : vector<18x16x16xf32> to vector<16x16x16xf32>
    %148 = vector.broadcast %122 : vector<1x1x16xf32> to vector<16x16x16xf32>
    %149 = arith.mulf %147, %148 : vector<16x16x16xf32>
    %150 = arith.addf %146, %149 : vector<16x16x16xf32>
    %c0_53 = arith.constant 0 : index
    %c2_54 = arith.constant 2 : index
    %c0_55 = arith.constant 0 : index
    %151 = vector.load %arg9[%c0_53, %c2_54, %c0_55] : memref<18x18x16xf32, #tpu.memory_space<vmem>>, vector<18x16x16xf32>
    %152 = vector.extract_strided_slice %151 {offsets = [0, 0, 0], sizes = [16, 16, 16], strides = [1, 1, 1]} : vector<18x16x16xf32> to vector<16x16x16xf32>
    %153 = vector.broadcast %107 : vector<1x1x16xf32> to vector<16x16x16xf32>
    %154 = arith.mulf %152, %153 : vector<16x16x16xf32>
    %155 = arith.addf %150, %154 : vector<16x16x16xf32>
    %156 = vector.extract_strided_slice %151 {offsets = [1, 0, 0], sizes = [16, 16, 16], strides = [1, 1, 1]} : vector<18x16x16xf32> to vector<16x16x16xf32>
    %157 = vector.broadcast %116 : vector<1x1x16xf32> to vector<16x16x16xf32>
    %158 = arith.mulf %156, %157 : vector<16x16x16xf32>
    %159 = arith.addf %155, %158 : vector<16x16x16xf32>
    %160 = vector.extract_strided_slice %151 {offsets = [2, 0, 0], sizes = [16, 16, 16], strides = [1, 1, 1]} : vector<18x16x16xf32> to vector<16x16x16xf32>
    %161 = vector.broadcast %125 : vector<1x1x16xf32> to vector<16x16x16xf32>
    %162 = arith.mulf %160, %161 : vector<16x16x16xf32>
    %163 = arith.addf %159, %162 : vector<16x16x16xf32>
    %c0_56 = arith.constant 0 : index
    %c0_57 = arith.constant 0 : index
    %164 = vector.load %arg7[%c0_56, %c0_57] : memref<1x16xf32, #tpu.memory_space<vmem>>, vector<1x16xf32>
    %165 = vector.shape_cast %164 : vector<1x16xf32> to vector<16xf32>
    %166 = vector.shape_cast %165 : vector<16xf32> to vector<1x1x16xf32>
    %167 = vector.broadcast %166 : vector<1x1x16xf32> to vector<16x16x16xf32>
    %168 = arith.addf %163, %167 : vector<16x16x16xf32>
    %c0_58 = arith.constant 0 : index
    %c0_59 = arith.constant 0 : index
    %c0_60 = arith.constant 0 : index
    %c0_61 = arith.constant 0 : index
    %169 = vector.load %arg1[%c0_58, %c0_59, %c0_60, %c0_61] : memref<1x16x16x16xf32, #tpu.memory_space<vmem>>, vector<1x16x16x16xf32>
    %170 = vector.shape_cast %169 : vector<1x16x16x16xf32> to vector<16x16x16xf32>
    %171 = arith.addf %170, %168 : vector<16x16x16xf32>
    %c0_62 = arith.constant 0 : index
    %c0_63 = arith.constant 0 : index
    %c0_64 = arith.constant 0 : index
    %c0_65 = arith.constant 0 : index
    %172 = vector.load %arg8[%c0_62, %c0_63, %c0_64, %c0_65] : memref<1x16x16x16xf32, #tpu.memory_space<vmem>>, vector<1x16x16x16xf32>
    %173 = vector.shape_cast %172 : vector<1x16x16x16xf32> to vector<16x16x16xf32>
    %174 = vector.shape_cast %171 : vector<16x16x16xf32> to vector<1x16x16x16xf32>
    tpu.vector_store %arg8[%c0_62, %c0_63, %c0_64, %c0_65], %174 {strides = array<i32>} : memref<1x16x16x16xf32, #tpu.memory_space<vmem>>, vector<1x16x16x16xf32>,
    return
  }
  func.func @transform_0(%arg0: i32) -> (i32, i32, i32, i32) {
    %c0_i32 = arith.constant 0 : i32
    %c0_i32_0 = arith.constant 0 : i32
    %c0_i32_1 = arith.constant 0 : i32
    %c0_i32_2 = arith.constant 0 : i32
    return %arg0, %c0_i32, %c0_i32_0, %c0_i32_1 : i32, i32, i32, i32
  }
  func.func @transform_1(%arg0: i32) -> (i32, i32, i32) {
    %c0_i32 = arith.constant 0 : i32
    %c0_i32_0 = arith.constant 0 : i32
    %c0_i32_1 = arith.constant 0 : i32
    %c0_i32_2 = arith.constant 0 : i32
    return %c0_i32, %c0_i32_0, %c0_i32_1 : i32, i32, i32
  }
  func.func @transform_2(%arg0: i32) -> (i32, i32) {
    %c0_i32 = arith.constant 0 : i32
    %c0_i32_0 = arith.constant 0 : i32
    %c0_i32_1 = arith.constant 0 : i32
    return %c0_i32, %c0_i32_0 : i32, i32
  }
  func.func @transform_3(%arg0: i32) -> (i32, i32) {
    %c0_i32 = arith.constant 0 : i32
    %c0_i32_0 = arith.constant 0 : i32
    %c0_i32_1 = arith.constant 0 : i32
    return %c0_i32, %c0_i32_0 : i32, i32
  }
  func.func @transform_4(%arg0: i32) -> (i32, i32) {
    %c0_i32 = arith.constant 0 : i32
    %c0_i32_0 = arith.constant 0 : i32
    %c0_i32_1 = arith.constant 0 : i32
    return %c0_i32, %c0_i32_0 : i32, i32
  }
  func.func @transform_5(%arg0: i32) -> (i32, i32, i32) {
    %c0_i32 = arith.constant 0 : i32
    %c0_i32_0 = arith.constant 0 : i32
    %c0_i32_1 = arith.constant 0 : i32
    %c0_i32_2 = arith.constant 0 : i32
    return %c0_i32, %c0_i32_0, %c0_i32_1 : i32, i32, i32
  }
  func.func @transform_6(%arg0: i32) -> (i32, i32) {
    %c0_i32 = arith.constant 0 : i32
    %c0_i32_0 = arith.constant 0 : i32
    %c0_i32_1 = arith.constant 0 : i32
    return %c0_i32, %c0_i32_0 : i32, i32
  }
  func.func @transform_7(%arg0: i32) -> (i32, i32, i32, i32) {
    %c0_i32 = arith.constant 0 : i32
    %c0_i32_0 = arith.constant 0 : i32
    %c0_i32_1 = arith.constant 0 : i32
    %c0_i32_2 = arith.constant 0 : i32
    return %arg0, %c0_i32, %c0_i32_0, %c0_i32_1 : i32, i32, i32, i32
  }
}

</mosaic_0001>

<llo_original>
// kernel: tpu_custom_call.1
$region0: #{tpu_custom_call.1}
  #allocation0 [shape = 'u32[]', space=smem, size = 0x4, offset = 0x4, fixed_abs, tag = 'smem constant byte address 0x4 - core index']
  #allocation1 [shape = 'u32[72,128]{1,0:T(1,128)}', space=vmem, size = 0x9000, scoped, tag = 'internal scratch']
  #allocation2 [shape = 'f32[18,18,16]{2,1,0:T(8,128)}', space=vmem, size = 0x36000, scoped, tag = 'scratch operand']
  %s0 = inlined_call_operand.hbm [shape: f32[2,16,16,16], index: 0, kind: input, shape index: {}]
  %s1 = inlined_call_operand.hbm [shape: f32[3,3,16], index: 1, kind: input, shape index: {}]
  %s2 = inlined_call_operand.vmem [shape: f32[1,16], index: 2, kind: input, shape index: {}]
  %s3 = inlined_call_operand.hbm [shape: f32[16,16], index: 3, kind: input, shape index: {}]
  %s4 = inlined_call_operand.vmem [shape: f32[1,16], index: 4, kind: input, shape index: {}]
  %s5 = inlined_call_operand.hbm [shape: f32[3,3,16], index: 5, kind: input, shape index: {}]
  %s6 = inlined_call_operand.vmem [shape: f32[1,16], index: 6, kind: input, shape index: {}]
  %s7 = inlined_call_operand.hbm [shape: f32[2,16,16,16], index: 7, kind: output, shape index: {}]
  %s8 = sld [smem:[#allocation0]]
  $region77: #{tpu_custom_call.1} parent=0
    _
  %s10 = ssub.s32 1, %s8
  %s11 = scalar_select 0, %s10, %s8
  $region1: #{tpu_custom_call.1} parent=0
    #allocation3 [shape = 'u8[262144]{0}', space=vmem, size = 0x40000, scoped, tag = 'input window, operand 0']
    #allocation4 [shape = 's32[2]{0}', space=sflag, size = 0x8, scoped, tag = 'scoped memory for tpu_custom_call.1']
    #allocation5 [shape = 's32[2]{0}', space=sflag, size = 0x8, scoped, tag = 'scoped memory for tpu_custom_call.1']
    #allocation6 [shape = 'u8[6144]{0}', space=vmem, size = 0x1800, scoped, tag = 'input window, operand 1, single buffered']
    #allocation7 [shape = 's32[1]{0}', space=sflag, size = 0x4, scoped, tag = 'scoped memory for tpu_custom_call.1']
    #allocation8 [shape = 'u8[8192]{0}', space=vmem, size = 0x2000, scoped, tag = 'input window, operand 3, single buffered']
    #allocation9 [shape = 'u8[6144]{0}', space=vmem, size = 0x1800, scoped, tag = 'input window, operand 5, single buffered']
    #allocation10 [shape = 's32[1]{0}', space=sflag, size = 0x4, scoped, tag = 'scoped memory for tpu_custom_call.1']
    #allocation11 [shape = 'u8[262144]{0}', space=vmem, size = 0x40000, scoped, tag = 'output window, operand 0']
    %12 = vsyncpa [#allocation4], 0
    %s13 = scalar_lea.sflag [#allocation4], 1
    %14 = vsyncpa %s13, 0
    %15 = vsyncpa [#allocation7], 0
    %16 = vsyncpa [#allocation10], 0
    %17 = vsyncpa [#allocation5], 0
    %s18 = scalar_lea.sflag [#allocation5], 1
    %19 = vsyncpa %s18, 0
    loop: start=0, step=1, limit=4
    $region2: #{tpu_custom_call.1} parent=1 // loop_pre_header
      _
    $region3: #{tpu_custom_call.1} parent=1 // loop_header
      %s21 = sphi 0, %s25
      %p22 = scmp.ge.s32.totalorder %s21, 4
      %s31 = sphi 0, %s33
      %s34 = sphi 0, %s31
      %s35 = sphi 0, %s34
      %s51 = sphi 0, %s35
      %s55 = sphi 0, %s55
      %s57 = sphi 0, %s55
      %s58 = sphi 0, %s57
      %s72 = sphi 0, %s58
      %s76 = sphi 0, %s76
      %s78 = sphi 0, %s76
      %s79 = sphi 0, %s78
      %s93 = sphi 0, %s79
      %s97 = sphi 0, %s97
      %s99 = sphi 0, %s97
      %s100 = sphi 0, %s99
      %s114 = sphi 0, %s100
      %s118 = sphi 0, %s118
      %s120 = sphi 0, %s118
      %s121 = sphi 0, %s120
      %s135 = sphi 0, %s121
      %s139 = sphi 0, %s139
      %s141 = sphi 0, %s139
      %s142 = sphi 0, %s141
      %s156 = sphi 0, %s142
      %s160 = sphi 0, %s160
      %s162 = sphi 0, %s160
      %s163 = sphi 0, %s162
      %s177 = sphi 0, %s163
      %s183 = sphi 0, %s185
      %s186 = sphi 0, %s183
      %s187 = sphi 0, %s186
      %s203 = sphi 0, %s187
    $region4: #{tpu_custom_call.1} parent=1 // loop_header_branch
      %24 = sbr.rel (%p22) target = $region8
    $region5: #{tpu_custom_call.1} parent=1 // loop_body
      %s26 = ssub.s32 %s21, 1
      %s27 = ssub.s32 %s21, 2
      %s28 = sadd.s32 %s21, 1
      %s29 = ssub.s32 %s21, %s28
      %p30 = scmp.eq.s32.totalorder %s29, 0
      %s32 = sadd.s32 %s31, 1
      %s33 = scalar_select %p30, %s31, %s32
      %p36 = pneg %p30
      %p37 = scmp.eq.s32.totalorder %s21, 1
      %p38 = por %p36, %p37
      %p39 = scmp.ne.s32.totalorder %s31, %s34
      %p40 = scmp.eq.s32.totalorder %s21, 0
      %p41 = por %p39, %p40
      %p42 = scmp.ne.s32.totalorder %s31, %s34
      %p43 = scmp.eq.s32.totalorder %s26, 1
      %p44 = por %p42, %p43
      %p45 = scmp.ne.s32.totalorder %s34, %s35
      %p46 = scmp.eq.s32.totalorder %s26, 0
      %p47 = por %p45, %p46
      %p48 = scmp.ne.s32.totalorder %s34, %s35
      %p49 = scmp.eq.s32.totalorder %s27, 1
      %p50 = por %p48, %p49
      %p52 = scmp.ne.s32.totalorder %s35, %s51
      %p53 = scmp.eq.s32.totalorder %s27, 0
      %p54 = por %p52, %p53
      %s56 = sadd.s32 %s55, 1
      %p59 = scmp.eq.s32.totalorder %s21, 1
      %p60 = scmp.ne.s32.totalorder %s55, %s57
      %p61 = scmp.eq.s32.totalorder %s21, 0
      %p62 = por %p60, %p61
      %p63 = scmp.ne.s32.totalorder %s55, %s57
      %p64 = scmp.eq.s32.totalorder %s26, 1
      %p65 = por %p63, %p64
      %p66 = scmp.ne.s32.totalorder %s57, %s58
      %p67 = scmp.eq.s32.totalorder %s26, 0
      %p68 = por %p66, %p67
      %p69 = scmp.ne.s32.totalorder %s57, %s58
      %p70 = scmp.eq.s32.totalorder %s27, 1
      %p71 = por %p69, %p70
      %p73 = scmp.ne.s32.totalorder %s58, %s72
      %p74 = scmp.eq.s32.totalorder %s27, 0
      %p75 = por %p73, %p74
      %s77 = sadd.s32 %s76, 1
      %p80 = scmp.eq.s32.totalorder %s21, 1
      %p81 = scmp.ne.s32.totalorder %s76, %s78
      %p82 = scmp.eq.s32.totalorder %s21, 0
      %p83 = por %p81, %p82
      %p84 = scmp.ne.s32.totalorder %s76, %s78
      %p85 = scmp.eq.s32.totalorder %s26, 1
      %p86 = por %p84, %p85
      %p87 = scmp.ne.s32.totalorder %s78, %s79
      %p88 = scmp.eq.s32.totalorder %s26, 0
      %p89 = por %p87, %p88
      %p90 = scmp.ne.s32.totalorder %s78, %s79
      %p91 = scmp.eq.s32.totalorder %s27, 1
      %p92 = por %p90, %p91
      %p94 = scmp.ne.s32.totalorder %s79, %s93
      %p95 = scmp.eq.s32.totalorder %s27, 0
      %p96 = por %p94, %p95
      %s98 = sadd.s32 %s97, 1
      %p101 = scmp.eq.s32.totalorder %s21, 1
      %p102 = scmp.ne.s32.totalorder %s97, %s99
      %p103 = scmp.eq.s32.totalorder %s21, 0
      %p104 = por %p102, %p103
      %p105 = scmp.ne.s32.totalorder %s97, %s99
      %p106 = scmp.eq.s32.totalorder %s26, 1
      %p107 = por %p105, %p106
      %p108 = scmp.ne.s32.totalorder %s99, %s100
      %p109 = scmp.eq.s32.totalorder %s26, 0
      %p110 = por %p108, %p109
      %p111 = scmp.ne.s32.totalorder %s99, %s100
      %p112 = scmp.eq.s32.totalorder %s27, 1
      %p113 = por %p111, %p112
      %p115 = scmp.ne.s32.totalorder %s100, %s114
      %p116 = scmp.eq.s32.totalorder %s27, 0
      %p117 = por %p115, %p116
      %s119 = sadd.s32 %s118, 1
      %p122 = scmp.eq.s32.totalorder %s21, 1
      %p123 = scmp.ne.s32.totalorder %s118, %s120
      %p124 = scmp.eq.s32.totalorder %s21, 0
      %p125 = por %p123, %p124
      %p126 = scmp.ne.s32.totalorder %s118, %s120
      %p127 = scmp.eq.s32.totalorder %s26, 1
      %p128 = por %p126, %p127
      %p129 = scmp.ne.s32.totalorder %s120, %s121
      %p130 = scmp.eq.s32.totalorder %s26, 0
      %p131 = por %p129, %p130
      %p132 = scmp.ne.s32.totalorder %s120, %s121
      %p133 = scmp.eq.s32.totalorder %s27, 1
      %p134 = por %p132, %p133
      %p136 = scmp.ne.s32.totalorder %s121, %s135
      %p137 = scmp.eq.s32.totalorder %s27, 0
      %p138 = por %p136, %p137
      %s140 = sadd.s32 %s139, 1
      %p143 = scmp.eq.s32.totalorder %s21, 1
      %p144 = scmp.ne.s32.totalorder %s139, %s141
      %p145 = scmp.eq.s32.totalorder %s21, 0
      %p146 = por %p144, %p145
      %p147 = scmp.ne.s32.totalorder %s139, %s141
      %p148 = scmp.eq.s32.totalorder %s26, 1
      %p149 = por %p147, %p148
      %p150 = scmp.ne.s32.totalorder %s141, %s142
      %p151 = scmp.eq.s32.totalorder %s26, 0
      %p152 = por %p150, %p151
      %p153 = scmp.ne.s32.totalorder %s141, %s142
      %p154 = scmp.eq.s32.totalorder %s27, 1
      %p155 = por %p153, %p154
      %p157 = scmp.ne.s32.totalorder %s142, %s156
      %p158 = scmp.eq.s32.totalorder %s27, 0
      %p159 = por %p157, %p158
      %s161 = sadd.s32 %s160, 1
      %p164 = scmp.eq.s32.totalorder %s21, 1
      %p165 = scmp.ne.s32.totalorder %s160, %s162
      %p166 = scmp.eq.s32.totalorder %s21, 0
      %p167 = por %p165, %p166
      %p168 = scmp.ne.s32.totalorder %s160, %s162
      %p169 = scmp.eq.s32.totalorder %s26, 1
      %p170 = por %p168, %p169
      %p171 = scmp.ne.s32.totalorder %s162, %s163
      %p172 = scmp.eq.s32.totalorder %s26, 0
      %p173 = por %p171, %p172
      %p174 = scmp.ne.s32.totalorder %s162, %s163
      %p175 = scmp.eq.s32.totalorder %s27, 1
      %p176 = por %p174, %p175
      %p178 = scmp.ne.s32.totalorder %s163, %s177
      %p179 = scmp.eq.s32.totalorder %s27, 0
      %p180 = por %p178, %p179
      %s181 = ssub.s32 %s21, %s28
      %p182 = scmp.eq.s32.totalorder %s181, 0
      %s184 = sadd.s32 %s183, 1
      %s185 = scalar_select %p182, %s183, %s184
      %p188 = pneg %p182
      %p189 = scmp.eq.s32.totalorder %s21, 1
      %p190 = por %p188, %p189
      %p191 = scmp.ne.s32.totalorder %s183, %s186
      %p192 = scmp.eq.s32.totalorder %s21, 0
      %p193 = por %p191, %p192
      %p194 = scmp.ne.s32.totalorder %s183, %s186
      %p195 = scmp.eq.s32.totalorder %s26, 1
      %p196 = por %p194, %p195
      %p197 = scmp.ne.s32.totalorder %s186, %s187
      %p198 = scmp.eq.s32.totalorder %s26, 0
      %p199 = por %p197, %p198
      %p200 = scmp.ne.s32.totalorder %s186, %s187
      %p201 = scmp.eq.s32.totalorder %s27, 1
      %p202 = por %p200, %p201
      %p204 = scmp.ne.s32.totalorder %s187, %s203
      %p205 = scmp.eq.s32.totalorder %s27, 0
      %p206 = por %p204, %p205
      %p207 = scmp.le.s32.totalorder 1, %s21
      %p208 = scmp.lt.s32.totalorder %s21, 3
      %p209 = pnand %p207, %p208
      %p210 = pneg %p209
      // Predicated region
      $region9: #{tpu_custom_call.1} parent=5 // pred_check
        _
      $region10: #{tpu_custom_call.1} parent=5 // pred_check_branch
        %212 = sbr.rel (%p209) target = $region12
      $region11: #{tpu_custom_call.1} parent=5 // pred_region
        %s213 = ssub.s32 %s21, 1
        // Predicated region
        $region13: #{tpu_custom_call.1} parent=11 // pred_check
          %p214 = pneg %p68
        $region14: #{tpu_custom_call.1} parent=11 // pred_check_branch
          %216 = sbr.rel (%p214) target = $region16
        $region15: #{tpu_custom_call.1} parent=11 // pred_region
          %218 = vsyncadd [#allocation7], 0
          %s219 = sshll.u32 %s1, 4
          %s220 = int_to_ptr.hbm [resolvable:$true] %s219
          %s221 = sshll.u32 [#allocation6], 4
          %s222 = int_to_ptr.vmem [resolvable:$true] %s221
          %227 = dma.hbm_to_vmem [thread:$0]  %s220, 192, %s222, [#allocation7], 64, 64, 4
        $region16: #{tpu_custom_call.1} parent=11 // pred_fallthru
          _
        // Predicated region
        $region17: #{tpu_custom_call.1} parent=11 // pred_check
          %p228 = pneg %p89
        $region18: #{tpu_custom_call.1} parent=11 // pred_check_branch
          %230 = sbr.rel (%p228) target = $region20
        $region19: #{tpu_custom_call.1} parent=11 // pred_region
          _
        $region20: #{tpu_custom_call.1} parent=11 // pred_fallthru
          _
        // Predicated region
        $region21: #{tpu_custom_call.1} parent=11 // pred_check
          %p231 = pneg %p110
        $region22: #{tpu_custom_call.1} parent=11 // pred_check_branch
          %233 = sbr.rel (%p231) target = $region24
        $region23: #{tpu_custom_call.1} parent=11 // pred_region
          %235 = vsyncadd [#allocation7], 0
          %s236 = sshll.u32 %s3, 4
          %s237 = int_to_ptr.hbm [resolvable:$true] %s236
          %s238 = sshll.u32 [#allocation8], 4
          %s239 = int_to_ptr.vmem [resolvable:$true] %s238
          %244 = dma.hbm_to_vmem [thread:$0]  %s237, 256, %s239, [#allocation7], 128, 128, 8
        $region24: #{tpu_custom_call.1} parent=11 // pred_fallthru
          _
        // Predicated region
        $region25: #{tpu_custom_call.1} parent=11 // pred_check
          %p245 = pneg %p131
        $region26: #{tpu_custom_call.1} parent=11 // pred_check_branch
          %247 = sbr.rel (%p245) target = $region28
        $region27: #{tpu_custom_call.1} parent=11 // pred_region
          _
        $region28: #{tpu_custom_call.1} parent=11 // pred_fallthru
          _
        // Predicated region
        $region29: #{tpu_custom_call.1} parent=11 // pred_check
          %p248 = pneg %p152
        $region30: #{tpu_custom_call.1} parent=11 // pred_check_branch
          %250 = sbr.rel (%p248) target = $region32
        $region31: #{tpu_custom_call.1} parent=11 // pred_region
          %252 = vsyncadd [#allocation10], 0
          %s253 = sshll.u32 %s5, 4
          %s254 = int_to_ptr.hbm [resolvable:$true] %s253
          %s255 = sshll.u32 [#allocation9], 4
          %s256 = int_to_ptr.vmem [resolvable:$true] %s255
          %261 = dma.hbm_to_vmem [thread:$0]  %s254, 192, %s256, [#allocation10], 64, 64, 4
        $region32: #{tpu_custom_call.1} parent=11 // pred_fallthru
          _
        // Predicated region
        $region33: #{tpu_custom_call.1} parent=11 // pred_check
          %p262 = pneg %p173
        $region34: #{tpu_custom_call.1} parent=11 // pred_check_branch
          %264 = sbr.rel (%p262) target = $region36
        $region35: #{tpu_custom_call.1} parent=11 // pred_region
          _
        $region36: #{tpu_custom_call.1} parent=11 // pred_fallthru
          _
      $region12: #{tpu_custom_call.1} parent=5 // pred_fallthru
        _
      %p265 = scmp.lt.s32.totalorder %s21, 2
      // Predicated region
      $region37: #{tpu_custom_call.1} parent=5 // pred_check
        %p266 = pneg %p265
      $region38: #{tpu_custom_call.1} parent=5 // pred_check_branch
        %268 = sbr.rel (%p266) target = $region40
      $region39: #{tpu_custom_call.1} parent=5 // pred_region
        // Predicated region
        $region41: #{tpu_custom_call.1} parent=39 // pred_check
          %p269 = pneg %p41
        $region42: #{tpu_custom_call.1} parent=39 // pred_check_branch
          %271 = sbr.rel (%p269) target = $region44
        $region43: #{tpu_custom_call.1} parent=39 // pred_region
          %s272 = sand.u32 %s31, 1
          %s273 = scalar_lea.sflag [#allocation4], %s272
          %s274 = sand.u32 %s31, 1
          %s275 = smul.addr %s274, 256
          %s276 = scalar_lea.vmem [#allocation3], %s275
          %278 = vsyncadd %s273, 0
          %s279 = smul.addr %s21, 32
          %s280 = smul.addr %s279, 8
          %s281 = scalar_lea.hbm %s0, %s280
          %s282 = sshll.u32 %s281, 4
          %s283 = int_to_ptr.hbm [resolvable:$true] %s282
          %s284 = sshll.u32 %s276, 4
          %s285 = int_to_ptr.vmem [resolvable:$true] %s284
          %290 = dma.hbm_to_vmem [thread:$0]  %s283, 4096, %s285, %s273, 128, 128, 8
        $region44: #{tpu_custom_call.1} parent=39 // pred_fallthru
          _
      $region40: #{tpu_custom_call.1} parent=5 // pred_fallthru
        _
      %p291 = scmp.le.s32.totalorder 1, %s21
      %p292 = scmp.lt.s32.totalorder %s21, 3
      %p293 = pnand %p291, %p292
      %p294 = pneg %p293
      // Predicated region
      $region45: #{tpu_custom_call.1} parent=5 // pred_check
        _
      $region46: #{tpu_custom_call.1} parent=5 // pred_check_branch
        %296 = sbr.rel (%p293) target = $region48
      $region47: #{tpu_custom_call.1} parent=5 // pred_region
        %s297 = ssub.s32 %s21, 1
        %s298 = sand.u32 %s34, 1
        %s299 = scalar_lea.sflag [#allocation4], %s298
        %s300 = sand.u32 %s34, 1
        %s301 = smul.addr %s300, 256
        %s302 = scalar_lea.vmem [#allocation3], %s301
        // Predicated region
        $region49: #{tpu_custom_call.1} parent=47 // pred_check
          %p303 = pneg %p47
        $region50: #{tpu_custom_call.1} parent=47 // pred_check_branch
          %305 = sbr.rel (%p303) target = $region52
        $region51: #{tpu_custom_call.1} parent=47 // pred_region
          %307 = dma.done %s299, 4096
        $region52: #{tpu_custom_call.1} parent=47 // pred_fallthru
          _
        // Predicated region
        $region53: #{tpu_custom_call.1} parent=47 // pred_check
          %p308 = pneg %p68
        $region54: #{tpu_custom_call.1} parent=47 // pred_check_branch
          %310 = sbr.rel (%p308) target = $region56
        $region55: #{tpu_custom_call.1} parent=47 // pred_region
          %312 = dma.done [#allocation7], 192
        $region56: #{tpu_custom_call.1} parent=47 // pred_fallthru
          _
        // Predicated region
        $region57: #{tpu_custom_call.1} parent=47 // pred_check
          %p313 = pneg %p110
        $region58: #{tpu_custom_call.1} parent=47 // pred_check_branch
          %315 = sbr.rel (%p313) target = $region60
        $region59: #{tpu_custom_call.1} parent=47 // pred_region
          %317 = dma.done [#allocation7], 256
        $region60: #{tpu_custom_call.1} parent=47 // pred_fallthru
          _
        // Predicated region
        $region61: #{tpu_custom_call.1} parent=47 // pred_check
          %p318 = pneg %p152
        $region62: #{tpu_custom_call.1} parent=47 // pred_check_branch
          %320 = sbr.rel (%p318) target = $region64
        $region63: #{tpu_custom_call.1} parent=47 // pred_region
          %322 = dma.done [#allocation10], 192
        $region64: #{tpu_custom_call.1} parent=47 // pred_fallthru
          _
        %s323 = sand.u32 %s34, 1
        %s324 = scalar_lea.sflag [#allocation4], %s323
        %s325 = sand.u32 %s34, 1
        %s326 = smul.addr %s325, 256
        %s327 = scalar_lea.vmem [#allocation3], %s326
        %p328 = pneg %p47
        %p329 = pneg %p44
        %p330 = pneg %p68
        %p331 = pneg %p65
        %p332 = pneg %p89
        %p333 = pneg %p86
        %p334 = pneg %p110
        %p335 = pneg %p107
        %p336 = pneg %p131
        %p337 = pneg %p128
        %p338 = pneg %p152
        %p339 = pneg %p149
        %p340 = pneg %p173
        %p341 = pneg %p170
        %p342 = pneg %p199
        %p343 = pneg %p196
        %s344 = sand.u32 %s186, 1
        %s345 = scalar_lea.sflag [#allocation5], %s344
        %s346 = sand.u32 %s186, 1
        %s347 = smul.addr %s346, 256
        %s348 = scalar_lea.vmem [#allocation11], %s347
        %vm349 = vcmask 130048
        %350 = vst.msk [vmem:[#allocation2] sm:$0xff] %vm349, 0.0
        %351 = vst.msk [vmem:[#allocation2 + $0x8] sm:$0xff] %vm349, 0.0
        %vm352 = vcmask 123904
        %353 = vst.msk [vmem:[#allocation2 + $0x10] sm:$0x3] %vm352, 0.0
        %s354 = scalar_lea.vmem [#allocation2], 408
        %355 = vst.msk [vmem:[%s354] sm:$0xff] %vm349, 0.0
        %356 = vst.msk [vmem:[%s354 + $0x8] sm:$0xff] %vm349, 0.0
        %357 = vst.msk [vmem:[%s354 + $0x10] sm:$0x3] %vm352, 0.0
        %vm358 = vcmask 122880
        %359 = vst.msk [vmem:[#allocation2] sm:$0x1] %vm358, 0.0
        %360 = vst.msk [vmem:[#allocation2 + $0x18] sm:$0x1] %vm358, 0.0
        %361 = vst.msk [vmem:[#allocation2 + $0x30] sm:$0x1] %vm358, 0.0
        %362 = vst.msk [vmem:[#allocation2 + $0x48] sm:$0x1] %vm358, 0.0
        %363 = vst.msk [vmem:[#allocation2 + $0x60] sm:$0x1] %vm358, 0.0
        %364 = vst.msk [vmem:[#allocation2 + $0x78] sm:$0x1] %vm358, 0.0
        %365 = vst.msk [vmem:[#allocation2 + $0x90] sm:$0x1] %vm358, 0.0
        %366 = vst.msk [vmem:[#allocation2 + $0xa8] sm:$0x1] %vm358, 0.0
        %367 = vst.msk [vmem:[#allocation2 + $0xc0] sm:$0x1] %vm358, 0.0
        %368 = vst.msk [vmem:[#allocation2 + $0xd8] sm:$0x1] %vm358, 0.0
        %369 = vst.msk [vmem:[#allocation2 + $0xf0] sm:$0x1] %vm358, 0.0
        %370 = vst.msk [vmem:[#allocation2 + $0x108] sm:$0x1] %vm358, 0.0
        %371 = vst.msk [vmem:[#allocation2 + $0x120] sm:$0x1] %vm358, 0.0
        %372 = vst.msk [vmem:[#allocation2 + $0x138] sm:$0x1] %vm358, 0.0
        %373 = vst.msk [vmem:[#allocation2 + $0x150] sm:$0x1] %vm358, 0.0
        %374 = vst.msk [vmem:[#allocation2 + $0x168] sm:$0x1] %vm358, 0.0
        %375 = vst.msk [vmem:[#allocation2 + $0x180] sm:$0x1] %vm358, 0.0
        %376 = vst.msk [vmem:[#allocation2 + $0x198] sm:$0x1] %vm358, 0.0
        %377 = vst.msk [vmem:[#allocation2 + $0x11] sm:$0x1] %vm358, 0.0
        %378 = vst.msk [vmem:[#allocation2 + $0x29] sm:$0x1] %vm358, 0.0
        %379 = vst.msk [vmem:[#allocation2 + $0x41] sm:$0x1] %vm358, 0.0
        %380 = vst.msk [vmem:[#allocation2 + $0x59] sm:$0x1] %vm358, 0.0
        %381 = vst.msk [vmem:[#allocation2 + $0x71] sm:$0x1] %vm358, 0.0
        %382 = vst.msk [vmem:[#allocation2 + $0x89] sm:$0x1] %vm358, 0.0
        %383 = vst.msk [vmem:[#allocation2 + $0xa1] sm:$0x1] %vm358, 0.0
        %384 = vst.msk [vmem:[#allocation2 + $0xb9] sm:$0x1] %vm358, 0.0
        %385 = vst.msk [vmem:[#allocation2 + $0xd1] sm:$0x1] %vm358, 0.0
        %386 = vst.msk [vmem:[#allocation2 + $0xe9] sm:$0x1] %vm358, 0.0
        %387 = vst.msk [vmem:[#allocation2 + $0x101] sm:$0x1] %vm358, 0.0
        %388 = vst.msk [vmem:[#allocation2 + $0x119] sm:$0x1] %vm358, 0.0
        %389 = vst.msk [vmem:[#allocation2 + $0x131] sm:$0x1] %vm358, 0.0
        %390 = vst.msk [vmem:[#allocation2 + $0x149] sm:$0x1] %vm358, 0.0
        %391 = vst.msk [vmem:[#allocation2 + $0x161] sm:$0x1] %vm358, 0.0
        %392 = vst.msk [vmem:[#allocation2 + $0x179] sm:$0x1] %vm358, 0.0
        %393 = vst.msk [vmem:[#allocation2 + $0x191] sm:$0x1] %vm358, 0.0
        %394 = vst.msk [vmem:[#allocation2 + $0x1a9] sm:$0x1] %vm358, 0.0
        %v395 = vld [vmem:[%s302] sm:$0xff]
        %v396 = vld [vmem:[%s302 + $0x8] sm:$0xff]
        %v397 = vld [vmem:[%s302 + $0x10] sm:$0xff]
        %v398 = vld [vmem:[%s302 + $0x18] sm:$0xff]
        %v399 = vld [vmem:[%s302 + $0x20] sm:$0xff]
        %v400 = vld [vmem:[%s302 + $0x28] sm:$0xff]
        %v401 = vld [vmem:[%s302 + $0x30] sm:$0xff]
        %v402 = vld [vmem:[%s302 + $0x38] sm:$0xff]
        %v403 = vld [vmem:[%s302 + $0x40] sm:$0xff]
        %v404 = vld [vmem:[%s302 + $0x48] sm:$0xff]
        %v405 = vld [vmem:[%s302 + $0x50] sm:$0xff]
        %v406 = vld [vmem:[%s302 + $0x58] sm:$0xff]
        %v407 = vld [vmem:[%s302 + $0x60] sm:$0xff]
        %v408 = vld [vmem:[%s302 + $0x68] sm:$0xff]
        %v409 = vld [vmem:[%s302 + $0x70] sm:$0xff]
        %v410 = vld [vmem:[%s302 + $0x78] sm:$0xff]
        %v411 = vld [vmem:[%s302 + $0x80] sm:$0xff]
        %v412 = vld [vmem:[%s302 + $0x88] sm:$0xff]
        %v413 = vld [vmem:[%s302 + $0x90] sm:$0xff]
        %v414 = vld [vmem:[%s302 + $0x98] sm:$0xff]
        %v415 = vld [vmem:[%s302 + $0xa0] sm:$0xff]
        %v416 = vld [vmem:[%s302 + $0xa8] sm:$0xff]
        %v417 = vld [vmem:[%s302 + $0xb0] sm:$0xff]
        %v418 = vld [vmem:[%s302 + $0xb8] sm:$0xff]
        %v419 = vld [vmem:[%s302 + $0xc0] sm:$0xff]
        %v420 = vld [vmem:[%s302 + $0xc8] sm:$0xff]
        %v421 = vld [vmem:[%s302 + $0xd0] sm:$0xff]
        %v422 = vld [vmem:[%s302 + $0xd8] sm:$0xff]
        %v423 = vld [vmem:[%s302 + $0xe0] sm:$0xff]
        %v424 = vld [vmem:[%s302 + $0xe8] sm:$0xff]
        %v425 = vld [vmem:[%s302 + $0xf0] sm:$0xff]
        %v426 = vld [vmem:[%s302 + $0xf8] sm:$0xff]
        %s427 = scalar_lea.vmem [#allocation2], 24
        %428 = vst.msk [vmem:[%s427 + $0x1] sm:$0xff] %vm349, %v395
        %429 = vst.msk [vmem:[%s427 + $0x9] sm:$0xff] %vm349, %v396
        %430 = vst.msk [vmem:[%s427 + $0x19] sm:$0xff] %vm349, %v397
        %431 = vst.msk [vmem:[%s427 + $0x21] sm:$0xff] %vm349, %v398
        %432 = vst.msk [vmem:[%s427 + $0x31] sm:$0xff] %vm349, %v399
        %433 = vst.msk [vmem:[%s427 + $0x39] sm:$0xff] %vm349, %v400
        %434 = vst.msk [vmem:[%s427 + $0x49] sm:$0xff] %vm349, %v401
        %435 = vst.msk [vmem:[%s427 + $0x51] sm:$0xff] %vm349, %v402
        %436 = vst.msk [vmem:[%s427 + $0x61] sm:$0xff] %vm349, %v403
        %437 = vst.msk [vmem:[%s427 + $0x69] sm:$0xff] %vm349, %v404
        %438 = vst.msk [vmem:[%s427 + $0x79] sm:$0xff] %vm349, %v405
        %439 = vst.msk [vmem:[%s427 + $0x81] sm:$0xff] %vm349, %v406
        %440 = vst.msk [vmem:[%s427 + $0x91] sm:$0xff] %vm349, %v407
        %441 = vst.msk [vmem:[%s427 + $0x99] sm:$0xff] %vm349, %v408
        %442 = vst.msk [vmem:[%s427 + $0xa9] sm:$0xff] %vm349, %v409
        %443 = vst.msk [vmem:[%s427 + $0xb1] sm:$0xff] %vm349, %v410
        %444 = vst.msk [vmem:[%s427 + $0xc1] sm:$0xff] %vm349, %v411
        %445 = vst.msk [vmem:[%s427 + $0xc9] sm:$0xff] %vm349, %v412
        %446 = vst.msk [vmem:[%s427 + $0xd9] sm:$0xff] %vm349, %v413
        %447 = vst.msk [vmem:[%s427 + $0xe1] sm:$0xff] %vm349, %v414
        %448 = vst.msk [vmem:[%s427 + $0xf1] sm:$0xff] %vm349, %v415
        %449 = vst.msk [vmem:[%s427 + $0xf9] sm:$0xff] %vm349, %v416
        %450 = vst.msk [vmem:[%s427 + $0x109] sm:$0xff] %vm349, %v417
        %451 = vst.msk [vmem:[%s427 + $0x111] sm:$0xff] %vm349, %v418
        %452 = vst.msk [vmem:[%s427 + $0x121] sm:$0xff] %vm349, %v419
        %453 = vst.msk [vmem:[%s427 + $0x129] sm:$0xff] %vm349, %v420
        %454 = vst.msk [vmem:[%s427 + $0x139] sm:$0xff] %vm349, %v421
        %455 = vst.msk [vmem:[%s427 + $0x141] sm:$0xff] %vm349, %v422
        %456 = vst.msk [vmem:[%s427 + $0x151] sm:$0xff] %vm349, %v423
        %457 = vst.msk [vmem:[%s427 + $0x159] sm:$0xff] %vm349, %v424
        %458 = vst.msk [vmem:[%s427 + $0x169] sm:$0xff] %vm349, %v425
        %459 = vst.msk [vmem:[%s427 + $0x171] sm:$0xff] %vm349, %v426
        %v460 = vld [vmem:[#allocation6] sm:$0x7]
        %v461 = vld [vmem:[#allocation6 + $0x4] sm:$0x7]
        %v462 = vld [vmem:[#allocation6 + $0x8] sm:$0x7]
        %v463 = vld [vmem:[#allocation2] sm:$0xff]
        %v464 = vld [vmem:[#allocation2 + $0x8] sm:$0xff]
        %v465 = vld [vmem:[#allocation2 + $0x18] sm:$0xff]
        %v466 = vld [vmem:[#allocation2 + $0x20] sm:$0xff]
        %v467 = vld [vmem:[#allocation2 + $0x30] sm:$0xff]
        %v468 = vld [vmem:[#allocation2 + $0x38] sm:$0xff]
        %v469 = vld [vmem:[#allocation2 + $0x48] sm:$0xff]
        %v470 = vld [vmem:[#allocation2 + $0x50] sm:$0xff]
        %v471 = vld [vmem:[#allocation2 + $0x60] sm:$0xff]
        %v472 = vld [vmem:[#allocation2 + $0x68] sm:$0xff]
        %v473 = vld [vmem:[#allocation2 + $0x78] sm:$0xff]
        %v474 = vld [vmem:[#allocation2 + $0x80] sm:$0xff]
        %v475 = vld [vmem:[#allocation2 + $0x90] sm:$0xff]
        %v476 = vld [vmem:[#allocation2 + $0x98] sm:$0xff]
        %v477 = vld [vmem:[#allocation2 + $0xa8] sm:$0xff]
        %v478 = vld [vmem:[#allocation2 + $0xb0] sm:$0xff]
        %v479 = vld [vmem:[#allocation2 + $0xc0] sm:$0xff]
        %v480 = vld [vmem:[#allocation2 + $0xc8] sm:$0xff]
        %v481 = vld [vmem:[#allocation2 + $0xd8] sm:$0xff]
        %v482 = vld [vmem:[#allocation2 + $0xe0] sm:$0xff]
        %v483 = vld [vmem:[#allocation2 + $0xf0] sm:$0xff]
        %v484 = vld [vmem:[#allocation2 + $0xf8] sm:$0xff]
        %v485 = vld [vmem:[#allocation2 + $0x108] sm:$0xff]
        %v486 = vld [vmem:[#allocation2 + $0x110] sm:$0xff]
        %v487 = vld [vmem:[#allocation2 + $0x120] sm:$0xff]
        %v488 = vld [vmem:[#allocation2 + $0x128] sm:$0xff]
        %v489 = vld [vmem:[#allocation2 + $0x138] sm:$0xff]
        %v490 = vld [vmem:[#allocation2 + $0x140] sm:$0xff]
        %v491 = vld [vmem:[#allocation2 + $0x150] sm:$0xff]
        %v492 = vld [vmem:[#allocation2 + $0x158] sm:$0xff]
        %v493 = vld [vmem:[#allocation2 + $0x168] sm:$0xff]
        %v494 = vld [vmem:[#allocation2 + $0x170] sm:$0xff]
        %v495 = vld [vmem:[#allocation2 + $0x180] sm:$0xff]
        %v496 = vld [vmem:[#allocation2 + $0x188] sm:$0xff]
        %v497 = vld [vmem:[#allocation2 + $0x198] sm:$0xff]
        %v498 = vld [vmem:[#allocation2 + $0x1a0] sm:$0xff]
        %v499 = vperm.slane %v460, 0
        %v500 = vmul.f32 %v463, %v499
        %v501 = vmul.f32 %v464, %v499
        %v502 = vmul.f32 %v465, %v499
        %v503 = vmul.f32 %v466, %v499
        %v504 = vmul.f32 %v467, %v499
        %v505 = vmul.f32 %v468, %v499
        %v506 = vmul.f32 %v469, %v499
        %v507 = vmul.f32 %v470, %v499
        %v508 = vmul.f32 %v471, %v499
        %v509 = vmul.f32 %v472, %v499
        %v510 = vmul.f32 %v473, %v499
        %v511 = vmul.f32 %v474, %v499
        %v512 = vmul.f32 %v475, %v499
        %v513 = vmul.f32 %v476, %v499
        %v514 = vmul.f32 %v477, %v499
        %v515 = vmul.f32 %v478, %v499
        %v516 = vmul.f32 %v479, %v499
        %v517 = vmul.f32 %v480, %v499
        %v518 = vmul.f32 %v481, %v499
        %v519 = vmul.f32 %v482, %v499
        %v520 = vmul.f32 %v483, %v499
        %v521 = vmul.f32 %v484, %v499
        %v522 = vmul.f32 %v485, %v499
        %v523 = vmul.f32 %v486, %v499
        %v524 = vmul.f32 %v487, %v499
        %v525 = vmul.f32 %v488, %v499
        %v526 = vmul.f32 %v489, %v499
        %v527 = vmul.f32 %v490, %v499
        %v528 = vmul.f32 %v491, %v499
        %v529 = vmul.f32 %v492, %v499
        %v530 = vmul.f32 %v493, %v499
        %v531 = vmul.f32 %v494, %v499
        %v532 = vperm.slane %v461, 0
        %v533 = vmul.f32 %v465, %v532
        %v534 = vmul.f32 %v466, %v532
        %v535 = vmul.f32 %v467, %v532
        %v536 = vmul.f32 %v468, %v532
        %v537 = vmul.f32 %v469, %v532
        %v538 = vmul.f32 %v470, %v532
        %v539 = vmul.f32 %v471, %v532
        %v540 = vmul.f32 %v472, %v532
        %v541 = vmul.f32 %v473, %v532
        %v542 = vmul.f32 %v474, %v532
        %v543 = vmul.f32 %v475, %v532
        %v544 = vmul.f32 %v476, %v532
        %v545 = vmul.f32 %v477, %v532
        %v546 = vmul.f32 %v478, %v532
        %v547 = vmul.f32 %v479, %v532
        %v548 = vmul.f32 %v480, %v532
        %v549 = vmul.f32 %v481, %v532
        %v550 = vmul.f32 %v482, %v532
        %v551 = vmul.f32 %v483, %v532
        %v552 = vmul.f32 %v484, %v532
        %v553 = vmul.f32 %v485, %v532
        %v554 = vmul.f32 %v486, %v532
        %v555 = vmul.f32 %v487, %v532
        %v556 = vmul.f32 %v488, %v532
        %v557 = vmul.f32 %v489, %v532
        %v558 = vmul.f32 %v490, %v532
        %v559 = vmul.f32 %v491, %v532
        %v560 = vmul.f32 %v492, %v532
        %v561 = vmul.f32 %v493, %v532
        %v562 = vmul.f32 %v494, %v532
        %v563 = vmul.f32 %v495, %v532
        %v564 = vmul.f32 %v496, %v532
        %v565 = vadd.f32 %v500, %v533
        %v566 = vadd.f32 %v501, %v534
        %v567 = vadd.f32 %v502, %v535
        %v568 = vadd.f32 %v503, %v536
        %v569 = vadd.f32 %v504, %v537
        %v570 = vadd.f32 %v505, %v538
        %v571 = vadd.f32 %v506, %v539
        %v572 = vadd.f32 %v507, %v540
        %v573 = vadd.f32 %v508, %v541
        %v574 = vadd.f32 %v509, %v542
        %v575 = vadd.f32 %v510, %v543
        %v576 = vadd.f32 %v511, %v544
        %v577 = vadd.f32 %v512, %v545
        %v578 = vadd.f32 %v513, %v546
        %v579 = vadd.f32 %v514, %v547
        %v580 = vadd.f32 %v515, %v548
        %v581 = vadd.f32 %v516, %v549
        %v582 = vadd.f32 %v517, %v550
        %v583 = vadd.f32 %v518, %v551
        %v584 = vadd.f32 %v519, %v552
        %v585 = vadd.f32 %v520, %v553
        %v586 = vadd.f32 %v521, %v554
        %v587 = vadd.f32 %v522, %v555
        %v588 = vadd.f32 %v523, %v556
        %v589 = vadd.f32 %v524, %v557
        %v590 = vadd.f32 %v525, %v558
        %v591 = vadd.f32 %v526, %v559
        %v592 = vadd.f32 %v527, %v560
        %v593 = vadd.f32 %v528, %v561
        %v594 = vadd.f32 %v529, %v562
        %v595 = vadd.f32 %v530, %v563
        %v596 = vadd.f32 %v531, %v564
        %v597 = vperm.slane %v462, 0
        %v598 = vmul.f32 %v467, %v597
        %v599 = vmul.f32 %v468, %v597
        %v600 = vmul.f32 %v469, %v597
        %v601 = vmul.f32 %v470, %v597
        %v602 = vmul.f32 %v471, %v597
        %v603 = vmul.f32 %v472, %v597
        %v604 = vmul.f32 %v473, %v597
        %v605 = vmul.f32 %v474, %v597
        %v606 = vmul.f32 %v475, %v597
        %v607 = vmul.f32 %v476, %v597
        %v608 = vmul.f32 %v477, %v597
        %v609 = vmul.f32 %v478, %v597
        %v610 = vmul.f32 %v479, %v597
        %v611 = vmul.f32 %v480, %v597
        %v612 = vmul.f32 %v481, %v597
        %v613 = vmul.f32 %v482, %v597
        %v614 = vmul.f32 %v483, %v597
        %v615 = vmul.f32 %v484, %v597
        %v616 = vmul.f32 %v485, %v597
        %v617 = vmul.f32 %v486, %v597
        %v618 = vmul.f32 %v487, %v597
        %v619 = vmul.f32 %v488, %v597
        %v620 = vmul.f32 %v489, %v597
        %v621 = vmul.f32 %v490, %v597
        %v622 = vmul.f32 %v491, %v597
        %v623 = vmul.f32 %v492, %v597
        %v624 = vmul.f32 %v493, %v597
        %v625 = vmul.f32 %v494, %v597
        %v626 = vmul.f32 %v495, %v597
        %v627 = vmul.f32 %v496, %v597
        %v628 = vmul.f32 %v497, %v597
        %v629 = vmul.f32 %v498, %v597
        %v630 = vadd.f32 %v565, %v598
        %v631 = vadd.f32 %v566, %v599
        %v632 = vadd.f32 %v567, %v600
        %v633 = vadd.f32 %v568, %v601
        %v634 = vadd.f32 %v569, %v602
        %v635 = vadd.f32 %v570, %v603
        %v636 = vadd.f32 %v571, %v604
        %v637 = vadd.f32 %v572, %v605
        %v638 = vadd.f32 %v573, %v606
        %v639 = vadd.f32 %v574, %v607
        %v640 = vadd.f32 %v575, %v608
        %v641 = vadd.f32 %v576, %v609
        %v642 = vadd.f32 %v577, %v610
        %v643 = vadd.f32 %v578, %v611
        %v644 = vadd.f32 %v579, %v612
        %v645 = vadd.f32 %v580, %v613
        %v646 = vadd.f32 %v581, %v614
        %v647 = vadd.f32 %v582, %v615
        %v648 = vadd.f32 %v583, %v616
        %v649 = vadd.f32 %v584, %v617
        %v650 = vadd.f32 %v585, %v618
        %v651 = vadd.f32 %v586, %v619
        %v652 = vadd.f32 %v587, %v620
        %v653 = vadd.f32 %v588, %v621
        %v654 = vadd.f32 %v589, %v622
        %v655 = vadd.f32 %v590, %v623
        %v656 = vadd.f32 %v591, %v624
        %v657 = vadd.f32 %v592, %v625
        %v658 = vadd.f32 %v593, %v626
        %v659 = vadd.f32 %v594, %v627
        %v660 = vadd.f32 %v595, %v628
        %v661 = vadd.f32 %v596, %v629
        %v662 = vld [vmem:[#allocation2 + $0x1] sm:$0xff]
        %v663 = vld [vmem:[#allocation2 + $0x9] sm:$0xff]
        %v664 = vld [vmem:[#allocation2 + $0x19] sm:$0xff]
        %v665 = vld [vmem:[#allocation2 + $0x21] sm:$0xff]
        %v666 = vld [vmem:[#allocation2 + $0x31] sm:$0xff]
        %v667 = vld [vmem:[#allocation2 + $0x39] sm:$0xff]
        %v668 = vld [vmem:[#allocation2 + $0x49] sm:$0xff]
        %v669 = vld [vmem:[#allocation2 + $0x51] sm:$0xff]
        %v670 = vld [vmem:[#allocation2 + $0x61] sm:$0xff]
        %v671 = vld [vmem:[#allocation2 + $0x69] sm:$0xff]
        %v672 = vld [vmem:[#allocation2 + $0x79] sm:$0xff]
        %v673 = vld [vmem:[#allocation2 + $0x81] sm:$0xff]
        %v674 = vld [vmem:[#allocation2 + $0x91] sm:$0xff]
        %v675 = vld [vmem:[#allocation2 + $0x99] sm:$0xff]
        %v676 = vld [vmem:[#allocation2 + $0xa9] sm:$0xff]
        %v677 = vld [vmem:[#allocation2 + $0xb1] sm:$0xff]
        %v678 = vld [vmem:[#allocation2 + $0xc1] sm:$0xff]
        %v679 = vld [vmem:[#allocation2 + $0xc9] sm:$0xff]
        %v680 = vld [vmem:[#allocation2 + $0xd9] sm:$0xff]
        %v681 = vld [vmem:[#allocation2 + $0xe1] sm:$0xff]
        %v682 = vld [vmem:[#allocation2 + $0xf1] sm:$0xff]
        %v683 = vld [vmem:[#allocation2 + $0xf9] sm:$0xff]
        %v684 = vld [vmem:[#allocation2 + $0x109] sm:$0xff]
        %v685 = vld [vmem:[#allocation2 + $0x111] sm:$0xff]
        %v686 = vld [vmem:[#allocation2 + $0x121] sm:$0xff]
        %v687 = vld [vmem:[#allocation2 + $0x129] sm:$0xff]
        %v688 = vld [vmem:[#allocation2 + $0x139] sm:$0xff]
        %v689 = vld [vmem:[#allocation2 + $0x141] sm:$0xff]
        %v690 = vld [vmem:[#allocation2 + $0x151] sm:$0xff]
        %v691 = vld [vmem:[#allocation2 + $0x159] sm:$0xff]
        %v692 = vld [vmem:[#allocation2 + $0x169] sm:$0xff]
        %v693 = vld [vmem:[#allocation2 + $0x171] sm:$0xff]
        %v694 = vld [vmem:[#allocation2 + $0x181] sm:$0xff]
        %v695 = vld [vmem:[#allocation2 + $0x189] sm:$0xff]
        %v696 = vld [vmem:[#allocation2 + $0x199] sm:$0xff]
        %v697 = vld [vmem:[#allocation2 + $0x1a1] sm:$0xff]
        %v698 = vperm.slane %v460, 1
        %v699 = vmul.f32 %v662, %v698
        %v700 = vmul.f32 %v663, %v698
        %v701 = vmul.f32 %v664, %v698
        %v702 = vmul.f32 %v665, %v698
        %v703 = vmul.f32 %v666, %v698
        %v704 = vmul.f32 %v667, %v698
        %v705 = vmul.f32 %v668, %v698
        %v706 = vmul.f32 %v669, %v698
        %v707 = vmul.f32 %v670, %v698
        %v708 = vmul.f32 %v671, %v698
        %v709 = vmul.f32 %v672, %v698
        %v710 = vmul.f32 %v673, %v698
        %v711 = vmul.f32 %v674, %v698
        %v712 = vmul.f32 %v675, %v698
        %v713 = vmul.f32 %v676, %v698
        %v714 = vmul.f32 %v677, %v698
        %v715 = vmul.f32 %v678, %v698
        %v716 = vmul.f32 %v679, %v698
        %v717 = vmul.f32 %v680, %v698
        %v718 = vmul.f32 %v681, %v698
        %v719 = vmul.f32 %v682, %v698
        %v720 = vmul.f32 %v683, %v698
        %v721 = vmul.f32 %v684, %v698
        %v722 = vmul.f32 %v685, %v698
        %v723 = vmul.f32 %v686, %v698
        %v724 = vmul.f32 %v687, %v698
        %v725 = vmul.f32 %v688, %v698
        %v726 = vmul.f32 %v689, %v698
        %v727 = vmul.f32 %v690, %v698
        %v728 = vmul.f32 %v691, %v698
        %v729 = vmul.f32 %v692, %v698
        %v730 = vmul.f32 %v693, %v698
        %v731 = vadd.f32 %v630, %v699
        %v732 = vadd.f32 %v631, %v700
        %v733 = vadd.f32 %v632, %v701
        %v734 = vadd.f32 %v633, %v702
        %v735 = vadd.f32 %v634, %v703
        %v736 = vadd.f32 %v635, %v704
        %v737 = vadd.f32 %v636, %v705
        %v738 = vadd.f32 %v637, %v706
        %v739 = vadd.f32 %v638, %v707
        %v740 = vadd.f32 %v639, %v708
        %v741 = vadd.f32 %v640, %v709
        %v742 = vadd.f32 %v641, %v710
        %v743 = vadd.f32 %v642, %v711
        %v744 = vadd.f32 %v643, %v712
        %v745 = vadd.f32 %v644, %v713
        %v746 = vadd.f32 %v645, %v714
        %v747 = vadd.f32 %v646, %v715
        %v748 = vadd.f32 %v647, %v716
        %v749 = vadd.f32 %v648, %v717
        %v750 = vadd.f32 %v649, %v718
        %v751 = vadd.f32 %v650, %v719
        %v752 = vadd.f32 %v651, %v720
        %v753 = vadd.f32 %v652, %v721
        %v754 = vadd.f32 %v653, %v722
        %v755 = vadd.f32 %v654, %v723
        %v756 = vadd.f32 %v655, %v724
        %v757 = vadd.f32 %v656, %v725
        %v758 = vadd.f32 %v657, %v726
        %v759 = vadd.f32 %v658, %v727
        %v760 = vadd.f32 %v659, %v728
        %v761 = vadd.f32 %v660, %v729
        %v762 = vadd.f32 %v661, %v730
        %v763 = vperm.slane %v461, 1
        %v764 = vmul.f32 %v664, %v763
        %v765 = vmul.f32 %v665, %v763
        %v766 = vmul.f32 %v666, %v763
        %v767 = vmul.f32 %v667, %v763
        %v768 = vmul.f32 %v668, %v763
        %v769 = vmul.f32 %v669, %v763
        %v770 = vmul.f32 %v670, %v763
        %v771 = vmul.f32 %v671, %v763
        %v772 = vmul.f32 %v672, %v763
        %v773 = vmul.f32 %v673, %v763
        %v774 = vmul.f32 %v674, %v763
        %v775 = vmul.f32 %v675, %v763
        %v776 = vmul.f32 %v676, %v763
        %v777 = vmul.f32 %v677, %v763
        %v778 = vmul.f32 %v678, %v763
        %v779 = vmul.f32 %v679, %v763
        %v780 = vmul.f32 %v680, %v763
        %v781 = vmul.f32 %v681, %v763
        %v782 = vmul.f32 %v682, %v763
        %v783 = vmul.f32 %v683, %v763
        %v784 = vmul.f32 %v684, %v763
        %v785 = vmul.f32 %v685, %v763
        %v786 = vmul.f32 %v686, %v763
        %v787 = vmul.f32 %v687, %v763
        %v788 = vmul.f32 %v688, %v763
        %v789 = vmul.f32 %v689, %v763
        %v790 = vmul.f32 %v690, %v763
        %v791 = vmul.f32 %v691, %v763
        %v792 = vmul.f32 %v692, %v763
        %v793 = vmul.f32 %v693, %v763
        %v794 = vmul.f32 %v694, %v763
        %v795 = vmul.f32 %v695, %v763
        %v796 = vadd.f32 %v731, %v764
        %v797 = vadd.f32 %v732, %v765
        %v798 = vadd.f32 %v733, %v766
        %v799 = vadd.f32 %v734, %v767
        %v800 = vadd.f32 %v735, %v768
        %v801 = vadd.f32 %v736, %v769
        %v802 = vadd.f32 %v737, %v770
        %v803 = vadd.f32 %v738, %v771
        %v804 = vadd.f32 %v739, %v772
        %v805 = vadd.f32 %v740, %v773
        %v806 = vadd.f32 %v741, %v774
        %v807 = vadd.f32 %v742, %v775
        %v808 = vadd.f32 %v743, %v776
        %v809 = vadd.f32 %v744, %v777
        %v810 = vadd.f32 %v745, %v778
        %v811 = vadd.f32 %v746, %v779
        %v812 = vadd.f32 %v747, %v780
        %v813 = vadd.f32 %v748, %v781
        %v814 = vadd.f32 %v749, %v782
        %v815 = vadd.f32 %v750, %v783
        %v816 = vadd.f32 %v751, %v784
        %v817 = vadd.f32 %v752, %v785
        %v818 = vadd.f32 %v753, %v786
        %v819 = vadd.f32 %v754, %v787
        %v820 = vadd.f32 %v755, %v788
        %v821 = vadd.f32 %v756, %v789
        %v822 = vadd.f32 %v757, %v790
        %v823 = vadd.f32 %v758, %v791
        %v824 = vadd.f32 %v759, %v792
        %v825 = vadd.f32 %v760, %v793
        %v826 = vadd.f32 %v761, %v794
        %v827 = vadd.f32 %v762, %v795
        %v828 = vperm.slane %v462, 1
        %v829 = vmul.f32 %v666, %v828
        %v830 = vmul.f32 %v667, %v828
        %v831 = vmul.f32 %v668, %v828
        %v832 = vmul.f32 %v669, %v828
        %v833 = vmul.f32 %v670, %v828
        %v834 = vmul.f32 %v671, %v828
        %v835 = vmul.f32 %v672, %v828
        %v836 = vmul.f32 %v673, %v828
        %v837 = vmul.f32 %v674, %v828
        %v838 = vmul.f32 %v675, %v828
        %v839 = vmul.f32 %v676, %v828
        %v840 = vmul.f32 %v677, %v828
        %v841 = vmul.f32 %v678, %v828
        %v842 = vmul.f32 %v679, %v828
        %v843 = vmul.f32 %v680, %v828
        %v844 = vmul.f32 %v681, %v828
        %v845 = vmul.f32 %v682, %v828
        %v846 = vmul.f32 %v683, %v828
        %v847 = vmul.f32 %v684, %v828
        %v848 = vmul.f32 %v685, %v828
        %v849 = vmul.f32 %v686, %v828
        %v850 = vmul.f32 %v687, %v828
        %v851 = vmul.f32 %v688, %v828
        %v852 = vmul.f32 %v689, %v828
        %v853 = vmul.f32 %v690, %v828
        %v854 = vmul.f32 %v691, %v828
        %v855 = vmul.f32 %v692, %v828
        %v856 = vmul.f32 %v693, %v828
        %v857 = vmul.f32 %v694, %v828
        %v858 = vmul.f32 %v695, %v828
        %v859 = vmul.f32 %v696, %v828
        %v860 = vmul.f32 %v697, %v828
        %v861 = vadd.f32 %v796, %v829
        %v862 = vadd.f32 %v797, %v830
        %v863 = vadd.f32 %v798, %v831
        %v864 = vadd.f32 %v799, %v832
        %v865 = vadd.f32 %v800, %v833
        %v866 = vadd.f32 %v801, %v834
        %v867 = vadd.f32 %v802, %v835
        %v868 = vadd.f32 %v803, %v836
        %v869 = vadd.f32 %v804, %v837
        %v870 = vadd.f32 %v805, %v838
        %v871 = vadd.f32 %v806, %v839
        %v872 = vadd.f32 %v807, %v840
        %v873 = vadd.f32 %v808, %v841
        %v874 = vadd.f32 %v809, %v842
        %v875 = vadd.f32 %v810, %v843
        %v876 = vadd.f32 %v811, %v844
        %v877 = vadd.f32 %v812, %v845
        %v878 = vadd.f32 %v813, %v846
        %v879 = vadd.f32 %v814, %v847
        %v880 = vadd.f32 %v815, %v848
        %v881 = vadd.f32 %v816, %v849
        %v882 = vadd.f32 %v817, %v850
        %v883 = vadd.f32 %v818, %v851
        %v884 = vadd.f32 %v819, %v852
        %v885 = vadd.f32 %v820, %v853
        %v886 = vadd.f32 %v821, %v854
        %v887 = vadd.f32 %v822, %v855
        %v888 = vadd.f32 %v823, %v856
        %v889 = vadd.f32 %v824, %v857
        %v890 = vadd.f32 %v825, %v858
        %v891 = vadd.f32 %v826, %v859
        %v892 = vadd.f32 %v827, %v860
        %v893 = vld [vmem:[#allocation2 + $0x2] sm:$0xff]
        %v894 = vld [vmem:[#allocation2 + $0xa] sm:$0xff]
        %v895 = vld [vmem:[#allocation2 + $0x1a] sm:$0xff]
        %v896 = vld [vmem:[#allocation2 + $0x22] sm:$0xff]
        %v897 = vld [vmem:[#allocation2 + $0x32] sm:$0xff]
        %v898 = vld [vmem:[#allocation2 + $0x3a] sm:$0xff]
        %v899 = vld [vmem:[#allocation2 + $0x4a] sm:$0xff]
        %v900 = vld [vmem:[#allocation2 + $0x52] sm:$0xff]
        %v901 = vld [vmem:[#allocation2 + $0x62] sm:$0xff]
        %v902 = vld [vmem:[#allocation2 + $0x6a] sm:$0xff]
        %v903 = vld [vmem:[#allocation2 + $0x7a] sm:$0xff]
        %v904 = vld [vmem:[#allocation2 + $0x82] sm:$0xff]
        %v905 = vld [vmem:[#allocation2 + $0x92] sm:$0xff]
        %v906 = vld [vmem:[#allocation2 + $0x9a] sm:$0xff]
        %v907 = vld [vmem:[#allocation2 + $0xaa] sm:$0xff]
        %v908 = vld [vmem:[#allocation2 + $0xb2] sm:$0xff]
        %v909 = vld [vmem:[#allocation2 + $0xc2] sm:$0xff]
        %v910 = vld [vmem:[#allocation2 + $0xca] sm:$0xff]
        %v911 = vld [vmem:[#allocation2 + $0xda] sm:$0xff]
        %v912 = vld [vmem:[#allocation2 + $0xe2] sm:$0xff]
        %v913 = vld [vmem:[#allocation2 + $0xf2] sm:$0xff]
        %v914 = vld [vmem:[#allocation2 + $0xfa] sm:$0xff]
        %v915 = vld [vmem:[#allocation2 + $0x10a] sm:$0xff]
        %v916 = vld [vmem:[#allocation2 + $0x112] sm:$0xff]
        %v917 = vld [vmem:[#allocation2 + $0x122] sm:$0xff]
        %v918 = vld [vmem:[#allocation2 + $0x12a] sm:$0xff]
        %v919 = vld [vmem:[#allocation2 + $0x13a] sm:$0xff]
        %v920 = vld [vmem:[#allocation2 + $0x142] sm:$0xff]
        %v921 = vld [vmem:[#allocation2 + $0x152] sm:$0xff]
        %v922 = vld [vmem:[#allocation2 + $0x15a] sm:$0xff]
        %v923 = vld [vmem:[#allocation2 + $0x16a] sm:$0xff]
        %v924 = vld [vmem:[#allocation2 + $0x172] sm:$0xff]
        %v925 = vld [vmem:[#allocation2 + $0x182] sm:$0xff]
        %v926 = vld [vmem:[#allocation2 + $0x18a] sm:$0xff]
        %v927 = vld [vmem:[#allocation2 + $0x19a] sm:$0xff]
        %v928 = vld [vmem:[#allocation2 + $0x1a2] sm:$0xff]
        %v929 = vperm.slane %v460, 2
        %v930 = vmul.f32 %v893, %v929
        %v931 = vmul.f32 %v894, %v929
        %v932 = vmul.f32 %v895, %v929
        %v933 = vmul.f32 %v896, %v929
        %v934 = vmul.f32 %v897, %v929
        %v935 = vmul.f32 %v898, %v929
        %v936 = vmul.f32 %v899, %v929
        %v937 = vmul.f32 %v900, %v929
        %v938 = vmul.f32 %v901, %v929
        %v939 = vmul.f32 %v902, %v929
        %v940 = vmul.f32 %v903, %v929
        %v941 = vmul.f32 %v904, %v929
        %v942 = vmul.f32 %v905, %v929
        %v943 = vmul.f32 %v906, %v929
        %v944 = vmul.f32 %v907, %v929
        %v945 = vmul.f32 %v908, %v929
        %v946 = vmul.f32 %v909, %v929
        %v947 = vmul.f32 %v910, %v929
        %v948 = vmul.f32 %v911, %v929
        %v949 = vmul.f32 %v912, %v929
        %v950 = vmul.f32 %v913, %v929
        %v951 = vmul.f32 %v914, %v929
        %v952 = vmul.f32 %v915, %v929
        %v953 = vmul.f32 %v916, %v929
        %v954 = vmul.f32 %v917, %v929
        %v955 = vmul.f32 %v918, %v929
        %v956 = vmul.f32 %v919, %v929
        %v957 = vmul.f32 %v920, %v929
        %v958 = vmul.f32 %v921, %v929
        %v959 = vmul.f32 %v922, %v929
        %v960 = vmul.f32 %v923, %v929
        %v961 = vmul.f32 %v924, %v929
        %v962 = vadd.f32 %v861, %v930
        %v963 = vadd.f32 %v862, %v931
        %v964 = vadd.f32 %v863, %v932
        %v965 = vadd.f32 %v864, %v933
        %v966 = vadd.f32 %v865, %v934
        %v967 = vadd.f32 %v866, %v935
        %v968 = vadd.f32 %v867, %v936
        %v969 = vadd.f32 %v868, %v937
        %v970 = vadd.f32 %v869, %v938
        %v971 = vadd.f32 %v870, %v939
        %v972 = vadd.f32 %v871, %v940
        %v973 = vadd.f32 %v872, %v941
        %v974 = vadd.f32 %v873, %v942
        %v975 = vadd.f32 %v874, %v943
        %v976 = vadd.f32 %v875, %v944
        %v977 = vadd.f32 %v876, %v945
        %v978 = vadd.f32 %v877, %v946
        %v979 = vadd.f32 %v878, %v947
        %v980 = vadd.f32 %v879, %v948
        %v981 = vadd.f32 %v880, %v949
        %v982 = vadd.f32 %v881, %v950
        %v983 = vadd.f32 %v882, %v951
        %v984 = vadd.f32 %v883, %v952
        %v985 = vadd.f32 %v884, %v953
        %v986 = vadd.f32 %v885, %v954
        %v987 = vadd.f32 %v886, %v955
        %v988 = vadd.f32 %v887, %v956
        %v989 = vadd.f32 %v888, %v957
        %v990 = vadd.f32 %v889, %v958
        %v991 = vadd.f32 %v890, %v959
        %v992 = vadd.f32 %v891, %v960
        %v993 = vadd.f32 %v892, %v961
        %v994 = vperm.slane %v461, 2
        %v995 = vmul.f32 %v895, %v994
        %v996 = vmul.f32 %v896, %v994
        %v997 = vmul.f32 %v897, %v994
        %v998 = vmul.f32 %v898, %v994
        %v999 = vmul.f32 %v899, %v994
        %v1000 = vmul.f32 %v900, %v994
        %v1001 = vmul.f32 %v901, %v994
        %v1002 = vmul.f32 %v902, %v994
        %v1003 = vmul.f32 %v903, %v994
        %v1004 = vmul.f32 %v904, %v994
        %v1005 = vmul.f32 %v905, %v994
        %v1006 = vmul.f32 %v906, %v994
        %v1007 = vmul.f32 %v907, %v994
        %v1008 = vmul.f32 %v908, %v994
        %v1009 = vmul.f32 %v909, %v994
        %v1010 = vmul.f32 %v910, %v994
        %v1011 = vmul.f32 %v911, %v994
        %v1012 = vmul.f32 %v912, %v994
        %v1013 = vmul.f32 %v913, %v994
        %v1014 = vmul.f32 %v914, %v994
        %v1015 = vmul.f32 %v915, %v994
        %v1016 = vmul.f32 %v916, %v994
        %v1017 = vmul.f32 %v917, %v994
        %v1018 = vmul.f32 %v918, %v994
        %v1019 = vmul.f32 %v919, %v994
        %v1020 = vmul.f32 %v920, %v994
        %v1021 = vmul.f32 %v921, %v994
        %v1022 = vmul.f32 %v922, %v994
        %v1023 = vmul.f32 %v923, %v994
        %v1024 = vmul.f32 %v924, %v994
        %v1025 = vmul.f32 %v925, %v994
        %v1026 = vmul.f32 %v926, %v994
        %v1027 = vadd.f32 %v962, %v995
        %v1028 = vadd.f32 %v963, %v996
        %v1029 = vadd.f32 %v964, %v997
        %v1030 = vadd.f32 %v965, %v998
        %v1031 = vadd.f32 %v966, %v999
        %v1032 = vadd.f32 %v967, %v1000
        %v1033 = vadd.f32 %v968, %v1001
        %v1034 = vadd.f32 %v969, %v1002
        %v1035 = vadd.f32 %v970, %v1003
        %v1036 = vadd.f32 %v971, %v1004
        %v1037 = vadd.f32 %v972, %v1005
        %v1038 = vadd.f32 %v973, %v1006
        %v1039 = vadd.f32 %v974, %v1007
        %v1040 = vadd.f32 %v975, %v1008
        %v1041 = vadd.f32 %v976, %v1009
        %v1042 = vadd.f32 %v977, %v1010
        %v1043 = vadd.f32 %v978, %v1011
        %v1044 = vadd.f32 %v979, %v1012
        %v1045 = vadd.f32 %v980, %v1013
        %v1046 = vadd.f32 %v981, %v1014
        %v1047 = vadd.f32 %v982, %v1015
        %v1048 = vadd.f32 %v983, %v1016
        %v1049 = vadd.f32 %v984, %v1017
        %v1050 = vadd.f32 %v985, %v1018
        %v1051 = vadd.f32 %v986, %v1019
        %v1052 = vadd.f32 %v987, %v1020
        %v1053 = vadd.f32 %v988, %v1021
        %v1054 = vadd.f32 %v989, %v1022
        %v1055 = vadd.f32 %v990, %v1023
        %v1056 = vadd.f32 %v991, %v1024
        %v1057 = vadd.f32 %v992, %v1025
        %v1058 = vadd.f32 %v993, %v1026
        %v1059 = vperm.slane %v462, 2
        %v1060 = vmul.f32 %v897, %v1059
        %v1061 = vmul.f32 %v898, %v1059
        %v1062 = vmul.f32 %v899, %v1059
        %v1063 = vmul.f32 %v900, %v1059
        %v1064 = vmul.f32 %v901, %v1059
        %v1065 = vmul.f32 %v902, %v1059
        %v1066 = vmul.f32 %v903, %v1059
        %v1067 = vmul.f32 %v904, %v1059
        %v1068 = vmul.f32 %v905, %v1059
        %v1069 = vmul.f32 %v906, %v1059
        %v1070 = vmul.f32 %v907, %v1059
        %v1071 = vmul.f32 %v908, %v1059
        %v1072 = vmul.f32 %v909, %v1059
        %v1073 = vmul.f32 %v910, %v1059
        %v1074 = vmul.f32 %v911, %v1059
        %v1075 = vmul.f32 %v912, %v1059
        %v1076 = vmul.f32 %v913, %v1059
        %v1077 = vmul.f32 %v914, %v1059
        %v1078 = vmul.f32 %v915, %v1059
        %v1079 = vmul.f32 %v916, %v1059
        %v1080 = vmul.f32 %v917, %v1059
        %v1081 = vmul.f32 %v918, %v1059
        %v1082 = vmul.f32 %v919, %v1059
        %v1083 = vmul.f32 %v920, %v1059
        %v1084 = vmul.f32 %v921, %v1059
        %v1085 = vmul.f32 %v922, %v1059
        %v1086 = vmul.f32 %v923, %v1059
        %v1087 = vmul.f32 %v924, %v1059
        %v1088 = vmul.f32 %v925, %v1059
        %v1089 = vmul.f32 %v926, %v1059
        %v1090 = vmul.f32 %v927, %v1059
        %v1091 = vmul.f32 %v928, %v1059
        %v1092 = vadd.f32 %v1027, %v1060
        %v1093 = vadd.f32 %v1028, %v1061
        %v1094 = vadd.f32 %v1029, %v1062
        %v1095 = vadd.f32 %v1030, %v1063
        %v1096 = vadd.f32 %v1031, %v1064
        %v1097 = vadd.f32 %v1032, %v1065
        %v1098 = vadd.f32 %v1033, %v1066
        %v1099 = vadd.f32 %v1034, %v1067
        %v1100 = vadd.f32 %v1035, %v1068
        %v1101 = vadd.f32 %v1036, %v1069
        %v1102 = vadd.f32 %v1037, %v1070
        %v1103 = vadd.f32 %v1038, %v1071
        %v1104 = vadd.f32 %v1039, %v1072
        %v1105 = vadd.f32 %v1040, %v1073
        %v1106 = vadd.f32 %v1041, %v1074
        %v1107 = vadd.f32 %v1042, %v1075
        %v1108 = vadd.f32 %v1043, %v1076
        %v1109 = vadd.f32 %v1044, %v1077
        %v1110 = vadd.f32 %v1045, %v1078
        %v1111 = vadd.f32 %v1046, %v1079
        %v1112 = vadd.f32 %v1047, %v1080
        %v1113 = vadd.f32 %v1048, %v1081
        %v1114 = vadd.f32 %v1049, %v1082
        %v1115 = vadd.f32 %v1050, %v1083
        %v1116 = vadd.f32 %v1051, %v1084
        %v1117 = vadd.f32 %v1052, %v1085
        %v1118 = vadd.f32 %v1053, %v1086
        %v1119 = vadd.f32 %v1054, %v1087
        %v1120 = vadd.f32 %v1055, %v1088
        %v1121 = vadd.f32 %v1056, %v1089
        %v1122 = vadd.f32 %v1057, %v1090
        %v1123 = vadd.f32 %v1058, %v1091
        %v1124 = vld [vmem:[%s2] sm:$0x1]
        %v1126 = vperm.slane %v1124, 0
        %v1128 = vadd.f32 %v1092, %v1126
        %v1129 = vadd.f32 %v1093, %v1126
        %v1130 = vadd.f32 %v1094, %v1126
        %v1131 = vadd.f32 %v1095, %v1126
        %v1132 = vadd.f32 %v1096, %v1126
        %v1133 = vadd.f32 %v1097, %v1126
        %v1134 = vadd.f32 %v1098, %v1126
        %v1135 = vadd.f32 %v1099, %v1126
        %v1136 = vadd.f32 %v1100, %v1126
        %v1137 = vadd.f32 %v1101, %v1126
        %v1138 = vadd.f32 %v1102, %v1126
        %v1139 = vadd.f32 %v1103, %v1126
        %v1140 = vadd.f32 %v1104, %v1126
        %v1141 = vadd.f32 %v1105, %v1126
        %v1142 = vadd.f32 %v1106, %v1126
        %v1143 = vadd.f32 %v1107, %v1126
        %v1144 = vadd.f32 %v1108, %v1126
        %v1145 = vadd.f32 %v1109, %v1126
        %v1146 = vadd.f32 %v1110, %v1126
        %v1147 = vadd.f32 %v1111, %v1126
        %v1148 = vadd.f32 %v1112, %v1126
        %v1149 = vadd.f32 %v1113, %v1126
        %v1150 = vadd.f32 %v1114, %v1126
        %v1151 = vadd.f32 %v1115, %v1126
        %v1152 = vadd.f32 %v1116, %v1126
        %v1153 = vadd.f32 %v1117, %v1126
        %v1154 = vadd.f32 %v1118, %v1126
        %v1155 = vadd.f32 %v1119, %v1126
        %v1156 = vadd.f32 %v1120, %v1126
        %v1157 = vadd.f32 %v1121, %v1126
        %v1158 = vadd.f32 %v1122, %v1126
        %v1159 = vadd.f32 %v1123, %v1126
        %v1160 = vmax.f32 %v1128, 0.0
        %v1161 = vmax.f32 %v1129, 0.0
        %v1162 = vmax.f32 %v1130, 0.0
        %v1163 = vmax.f32 %v1131, 0.0
        %v1164 = vmax.f32 %v1132, 0.0
        %v1165 = vmax.f32 %v1133, 0.0
        %v1166 = vmax.f32 %v1134, 0.0
        %v1167 = vmax.f32 %v1135, 0.0
        %v1168 = vmax.f32 %v1136, 0.0
        %v1169 = vmax.f32 %v1137, 0.0
        %v1170 = vmax.f32 %v1138, 0.0
        %v1171 = vmax.f32 %v1139, 0.0
        %v1172 = vmax.f32 %v1140, 0.0
        %v1173 = vmax.f32 %v1141, 0.0
        %v1174 = vmax.f32 %v1142, 0.0
        %v1175 = vmax.f32 %v1143, 0.0
        %v1176 = vmax.f32 %v1144, 0.0
        %v1177 = vmax.f32 %v1145, 0.0
        %v1178 = vmax.f32 %v1146, 0.0
        %v1179 = vmax.f32 %v1147, 0.0
        %v1180 = vmax.f32 %v1148, 0.0
        %v1181 = vmax.f32 %v1149, 0.0
        %v1182 = vmax.f32 %v1150, 0.0
        %v1183 = vmax.f32 %v1151, 0.0
        %v1184 = vmax.f32 %v1152, 0.0
        %v1185 = vmax.f32 %v1153, 0.0
        %v1186 = vmax.f32 %v1154, 0.0
        %v1187 = vmax.f32 %v1155, 0.0
        %v1188 = vmax.f32 %v1156, 0.0
        %v1189 = vmax.f32 %v1157, 0.0
        %v1190 = vmax.f32 %v1158, 0.0
        %v1191 = vmax.f32 %v1159, 0.0
        %v1192 = vmin.f32 %v1160, 6.0
        %v1193 = vmin.f32 %v1161, 6.0
        %v1194 = vmin.f32 %v1162, 6.0
        %v1195 = vmin.f32 %v1163, 6.0
        %v1196 = vmin.f32 %v1164, 6.0
        %v1197 = vmin.f32 %v1165, 6.0
        %v1198 = vmin.f32 %v1166, 6.0
        %v1199 = vmin.f32 %v1167, 6.0
        %v1200 = vmin.f32 %v1168, 6.0
        %v1201 = vmin.f32 %v1169, 6.0
        %v1202 = vmin.f32 %v1170, 6.0
        %v1203 = vmin.f32 %v1171, 6.0
        %v1204 = vmin.f32 %v1172, 6.0
        %v1205 = vmin.f32 %v1173, 6.0
        %v1206 = vmin.f32 %v1174, 6.0
        %v1207 = vmin.f32 %v1175, 6.0
        %v1208 = vmin.f32 %v1176, 6.0
        %v1209 = vmin.f32 %v1177, 6.0
        %v1210 = vmin.f32 %v1178, 6.0
        %v1211 = vmin.f32 %v1179, 6.0
        %v1212 = vmin.f32 %v1180, 6.0
        %v1213 = vmin.f32 %v1181, 6.0
        %v1214 = vmin.f32 %v1182, 6.0
        %v1215 = vmin.f32 %v1183, 6.0
        %v1216 = vmin.f32 %v1184, 6.0
        %v1217 = vmin.f32 %v1185, 6.0
        %v1218 = vmin.f32 %v1186, 6.0
        %v1219 = vmin.f32 %v1187, 6.0
        %v1220 = vmin.f32 %v1188, 6.0
        %v1221 = vmin.f32 %v1189, 6.0
        %v1222 = vmin.f32 %v1190, 6.0
        %v1223 = vmin.f32 %v1191, 6.0
        %v1224 = vld [vmem:[#allocation8] sm:$0xff]
        %v1225 = vld [vmem:[#allocation8 + $0x8] sm:$0xff]
        %v1226 = vld [vmem:[%s4] sm:$0x1]
        %v1228 = vperm.slane %v1226, 0
        %v1231 = vsel %vm349, %v1192, 0
        %v1234 = vsel %vm349, %v1193, 0
        %v1237 = vsel %vm349, %v1194, 0
        %v1240 = vsel %vm349, %v1195, 0
        %v1243 = vsel %vm349, %v1196, 0
        %v1246 = vsel %vm349, %v1197, 0
        %v1249 = vsel %vm349, %v1198, 0
        %v1252 = vsel %vm349, %v1199, 0
        %v1255 = vsel %vm349, %v1200, 0
        %v1258 = vsel %vm349, %v1201, 0
        %v1261 = vsel %vm349, %v1202, 0
        %v1264 = vsel %vm349, %v1203, 0
        %v1267 = vsel %vm349, %v1204, 0
        %v1270 = vsel %vm349, %v1205, 0
        %v1273 = vsel %vm349, %v1206, 0
        %v1276 = vsel %vm349, %v1207, 0
        %v1279 = vsel %vm349, %v1208, 0
        %v1282 = vsel %vm349, %v1209, 0
        %v1285 = vsel %vm349, %v1210, 0
        %v1288 = vsel %vm349, %v1211, 0
        %v1291 = vsel %vm349, %v1212, 0
        %v1294 = vsel %vm349, %v1213, 0
        %v1297 = vsel %vm349, %v1214, 0
        %v1300 = vsel %vm349, %v1215, 0
        %v1303 = vsel %vm349, %v1216, 0
        %v1306 = vsel %vm349, %v1217, 0
        %v1309 = vsel %vm349, %v1218, 0
        %v1312 = vsel %vm349, %v1219, 0
        %v1315 = vsel %vm349, %v1220, 0
        %v1318 = vsel %vm349, %v1221, 0
        %v1321 = vsel %vm349, %v1222, 0
        %v1324 = vsel %vm349, %v1223, 0
        %1326 = vmatpush.msra.mxu0 0.0
        %1327 = vmatpush.msra.mxu0 0.0
        %1328 = vmatpush.msra.mxu0 0.0
        %1329 = vmatpush.msra.mxu0 0.0
        %1330 = vmatpush.msra.mxu0 0.0
        %1331 = vmatpush.msra.mxu0 0.0
        %1332 = vmatpush.msra.mxu0 0.0
        %1333 = vmatpush.msra.mxu0 0.0
        %1334 = vmatpush.msra.mxu0 0.0
        %1335 = vmatpush.msra.mxu0 0.0
        %1336 = vmatpush.msra.mxu0 0.0
        %1337 = vmatpush.msra.mxu0 0.0
        %1338 = vmatpush.msra.mxu0 0.0
        %1339 = vmatpush.msra.mxu0 0.0
        %1340 = vmatpush.msra.mxu0 %v1225
        %1341 = vmatpush.msra.mxu0 %v1224
        %1342 = vmatmul.f32.gmra.mxu0 %v1231
        %v1343 = vpop.f32.mrf.mxu0
        %v1344 = vadd.f32 %v1228, %v1343
        %1345 = vmatmul.f32.gmra.mxu0 %v1234
        %v1346 = vpop.f32.mrf.mxu0
        %v1347 = vadd.f32 %v1228, %v1346
        %1348 = vmatmul.f32.gmra.mxu0 %v1237
        %v1349 = vpop.f32.mrf.mxu0
        %v1350 = vadd.f32 %v1228, %v1349
        %1351 = vmatmul.f32.gmra.mxu0 %v1240
        %v1352 = vpop.f32.mrf.mxu0
        %v1353 = vadd.f32 %v1228, %v1352
        %1354 = vmatmul.f32.gmra.mxu0 %v1243
        %v1355 = vpop.f32.mrf.mxu0
        %v1356 = vadd.f32 %v1228, %v1355
        %1357 = vmatmul.f32.gmra.mxu0 %v1246
        %v1358 = vpop.f32.mrf.mxu0
        %v1359 = vadd.f32 %v1228, %v1358
        %1360 = vmatmul.f32.gmra.mxu0 %v1249
        %v1361 = vpop.f32.mrf.mxu0
        %v1362 = vadd.f32 %v1228, %v1361
        %1363 = vmatmul.f32.gmra.mxu0 %v1252
        %v1364 = vpop.f32.mrf.mxu0
        %v1365 = vadd.f32 %v1228, %v1364
        %1366 = vmatmul.f32.gmra.mxu0 %v1255
        %v1367 = vpop.f32.mrf.mxu0
        %v1368 = vadd.f32 %v1228, %v1367
        %1369 = vmatmul.f32.gmra.mxu0 %v1258
        %v1370 = vpop.f32.mrf.mxu0
        %v1371 = vadd.f32 %v1228, %v1370
        %1372 = vmatmul.f32.gmra.mxu0 %v1261
        %v1373 = vpop.f32.mrf.mxu0
        %v1374 = vadd.f32 %v1228, %v1373
        %1375 = vmatmul.f32.gmra.mxu0 %v1264
        %v1376 = vpop.f32.mrf.mxu0
        %v1377 = vadd.f32 %v1228, %v1376
        %1378 = vmatmul.f32.gmra.mxu0 %v1267
        %v1379 = vpop.f32.mrf.mxu0
        %v1380 = vadd.f32 %v1228, %v1379
        %1381 = vmatmul.f32.gmra.mxu0 %v1270
        %v1382 = vpop.f32.mrf.mxu0
        %v1383 = vadd.f32 %v1228, %v1382
        %1384 = vmatmul.f32.gmra.mxu0 %v1273
        %v1385 = vpop.f32.mrf.mxu0
        %v1386 = vadd.f32 %v1228, %v1385
        %1387 = vmatmul.f32.gmra.mxu0 %v1276
        %v1388 = vpop.f32.mrf.mxu0
        %v1389 = vadd.f32 %v1228, %v1388
        %1390 = vmatmul.f32.gmra.mxu0 %v1279
        %v1391 = vpop.f32.mrf.mxu0
        %v1392 = vadd.f32 %v1228, %v1391
        %1393 = vmatmul.f32.gmra.mxu0 %v1282
        %v1394 = vpop.f32.mrf.mxu0
        %v1395 = vadd.f32 %v1228, %v1394
        %1396 = vmatmul.f32.gmra.mxu0 %v1285
        %v1397 = vpop.f32.mrf.mxu0
        %v1398 = vadd.f32 %v1228, %v1397
        %1399 = vmatmul.f32.gmra.mxu0 %v1288
        %v1400 = vpop.f32.mrf.mxu0
        %v1401 = vadd.f32 %v1228, %v1400
        %1402 = vmatmul.f32.gmra.mxu0 %v1291
        %v1403 = vpop.f32.mrf.mxu0
        %v1404 = vadd.f32 %v1228, %v1403
        %1405 = vmatmul.f32.gmra.mxu0 %v1294
        %v1406 = vpop.f32.mrf.mxu0
        %v1407 = vadd.f32 %v1228, %v1406
        %1408 = vmatmul.f32.gmra.mxu0 %v1297
        %v1409 = vpop.f32.mrf.mxu0
        %v1410 = vadd.f32 %v1228, %v1409
        %1411 = vmatmul.f32.gmra.mxu0 %v1300
        %v1412 = vpop.f32.mrf.mxu0
        %v1413 = vadd.f32 %v1228, %v1412
        %1414 = vmatmul.f32.gmra.mxu0 %v1303
        %v1415 = vpop.f32.mrf.mxu0
        %v1416 = vadd.f32 %v1228, %v1415
        %1417 = vmatmul.f32.gmra.mxu0 %v1306
        %v1418 = vpop.f32.mrf.mxu0
        %v1419 = vadd.f32 %v1228, %v1418
        %1420 = vmatmul.f32.gmra.mxu0 %v1309
        %v1421 = vpop.f32.mrf.mxu0
        %v1422 = vadd.f32 %v1228, %v1421
        %1423 = vmatmul.f32.gmra.mxu0 %v1312
        %v1424 = vpop.f32.mrf.mxu0
        %v1425 = vadd.f32 %v1228, %v1424
        %1426 = vmatmul.f32.gmra.mxu0 %v1315
        %v1427 = vpop.f32.mrf.mxu0
        %v1428 = vadd.f32 %v1228, %v1427
        %1429 = vmatmul.f32.gmra.mxu0 %v1318
        %v1430 = vpop.f32.mrf.mxu0
        %v1431 = vadd.f32 %v1228, %v1430
        %1432 = vmatmul.f32.gmra.mxu0 %v1321
        %v1433 = vpop.f32.mrf.mxu0
        %v1434 = vadd.f32 %v1228, %v1433
        %1435 = vmatmul.f32.gmra.mxu0 %v1324
        %v1436 = vpop.f32.mrf.mxu0
        %v1437 = vadd.f32 %v1228, %v1436
        %1438 = vdwg.mxu0
        %v1439 = vmax.f32 %v1344, 0.0
        %v1440 = vmax.f32 %v1347, 0.0
        %v1441 = vmax.f32 %v1350, 0.0
        %v1442 = vmax.f32 %v1353, 0.0
        %v1443 = vmax.f32 %v1356, 0.0
        %v1444 = vmax.f32 %v1359, 0.0
        %v1445 = vmax.f32 %v1362, 0.0
        %v1446 = vmax.f32 %v1365, 0.0
        %v1447 = vmax.f32 %v1368, 0.0
        %v1448 = vmax.f32 %v1371, 0.0
        %v1449 = vmax.f32 %v1374, 0.0
        %v1450 = vmax.f32 %v1377, 0.0
        %v1451 = vmax.f32 %v1380, 0.0
        %v1452 = vmax.f32 %v1383, 0.0
        %v1453 = vmax.f32 %v1386, 0.0
        %v1454 = vmax.f32 %v1389, 0.0
        %v1455 = vmax.f32 %v1392, 0.0
        %v1456 = vmax.f32 %v1395, 0.0
        %v1457 = vmax.f32 %v1398, 0.0
        %v1458 = vmax.f32 %v1401, 0.0
        %v1459 = vmax.f32 %v1404, 0.0
        %v1460 = vmax.f32 %v1407, 0.0
        %v1461 = vmax.f32 %v1410, 0.0
        %v1462 = vmax.f32 %v1413, 0.0
        %v1463 = vmax.f32 %v1416, 0.0
        %v1464 = vmax.f32 %v1419, 0.0
        %v1465 = vmax.f32 %v1422, 0.0
        %v1466 = vmax.f32 %v1425, 0.0
        %v1467 = vmax.f32 %v1428, 0.0
        %v1468 = vmax.f32 %v1431, 0.0
        %v1469 = vmax.f32 %v1434, 0.0
        %v1470 = vmax.f32 %v1437, 0.0
        %v1471 = vmin.f32 %v1439, 6.0
        %v1472 = vmin.f32 %v1440, 6.0
        %v1473 = vmin.f32 %v1441, 6.0
        %v1474 = vmin.f32 %v1442, 6.0
        %v1475 = vmin.f32 %v1443, 6.0
        %v1476 = vmin.f32 %v1444, 6.0
        %v1477 = vmin.f32 %v1445, 6.0
        %v1478 = vmin.f32 %v1446, 6.0
        %v1479 = vmin.f32 %v1447, 6.0
        %v1480 = vmin.f32 %v1448, 6.0
        %v1481 = vmin.f32 %v1449, 6.0
        %v1482 = vmin.f32 %v1450, 6.0
        %v1483 = vmin.f32 %v1451, 6.0
        %v1484 = vmin.f32 %v1452, 6.0
        %v1485 = vmin.f32 %v1453, 6.0
        %v1486 = vmin.f32 %v1454, 6.0
        %v1487 = vmin.f32 %v1455, 6.0
        %v1488 = vmin.f32 %v1456, 6.0
        %v1489 = vmin.f32 %v1457, 6.0
        %v1490 = vmin.f32 %v1458, 6.0
        %v1491 = vmin.f32 %v1459, 6.0
        %v1492 = vmin.f32 %v1460, 6.0
        %v1493 = vmin.f32 %v1461, 6.0
        %v1494 = vmin.f32 %v1462, 6.0
        %v1495 = vmin.f32 %v1463, 6.0
        %v1496 = vmin.f32 %v1464, 6.0
        %v1497 = vmin.f32 %v1465, 6.0
        %v1498 = vmin.f32 %v1466, 6.0
        %v1499 = vmin.f32 %v1467, 6.0
        %v1500 = vmin.f32 %v1468, 6.0
        %v1501 = vmin.f32 %v1469, 6.0
        %v1502 = vmin.f32 %v1470, 6.0
        %1503 = vst.msk [vmem:[%s427 + $0x1] sm:$0xff] %vm349, %v1471
        %1504 = vst.msk [vmem:[%s427 + $0x9] sm:$0xff] %vm349, %v1472
        %1505 = vst.msk [vmem:[%s427 + $0x19] sm:$0xff] %vm349, %v1473
        %1506 = vst.msk [vmem:[%s427 + $0x21] sm:$0xff] %vm349, %v1474
        %1507 = vst.msk [vmem:[%s427 + $0x31] sm:$0xff] %vm349, %v1475
        %1508 = vst.msk [vmem:[%s427 + $0x39] sm:$0xff] %vm349, %v1476
        %1509 = vst.msk [vmem:[%s427 + $0x49] sm:$0xff] %vm349, %v1477
        %1510 = vst.msk [vmem:[%s427 + $0x51] sm:$0xff] %vm349, %v1478
        %1511 = vst.msk [vmem:[%s427 + $0x61] sm:$0xff] %vm349, %v1479
        %1512 = vst.msk [vmem:[%s427 + $0x69] sm:$0xff] %vm349, %v1480
        %1513 = vst.msk [vmem:[%s427 + $0x79] sm:$0xff] %vm349, %v1481
        %1514 = vst.msk [vmem:[%s427 + $0x81] sm:$0xff] %vm349, %v1482
        %1515 = vst.msk [vmem:[%s427 + $0x91] sm:$0xff] %vm349, %v1483
        %1516 = vst.msk [vmem:[%s427 + $0x99] sm:$0xff] %vm349, %v1484
        %1517 = vst.msk [vmem:[%s427 + $0xa9] sm:$0xff] %vm349, %v1485
        %1518 = vst.msk [vmem:[%s427 + $0xb1] sm:$0xff] %vm349, %v1486
        %1519 = vst.msk [vmem:[%s427 + $0xc1] sm:$0xff] %vm349, %v1487
        %1520 = vst.msk [vmem:[%s427 + $0xc9] sm:$0xff] %vm349, %v1488
        %1521 = vst.msk [vmem:[%s427 + $0xd9] sm:$0xff] %vm349, %v1489
        %1522 = vst.msk [vmem:[%s427 + $0xe1] sm:$0xff] %vm349, %v1490
        %1523 = vst.msk [vmem:[%s427 + $0xf1] sm:$0xff] %vm349, %v1491
        %1524 = vst.msk [vmem:[%s427 + $0xf9] sm:$0xff] %vm349, %v1492
        %1525 = vst.msk [vmem:[%s427 + $0x109] sm:$0xff] %vm349, %v1493
        %1526 = vst.msk [vmem:[%s427 + $0x111] sm:$0xff] %vm349, %v1494
        %1527 = vst.msk [vmem:[%s427 + $0x121] sm:$0xff] %vm349, %v1495
        %1528 = vst.msk [vmem:[%s427 + $0x129] sm:$0xff] %vm349, %v1496
        %1529 = vst.msk [vmem:[%s427 + $0x139] sm:$0xff] %vm349, %v1497
        %1530 = vst.msk [vmem:[%s427 + $0x141] sm:$0xff] %vm349, %v1498
        %1531 = vst.msk [vmem:[%s427 + $0x151] sm:$0xff] %vm349, %v1499
        %1532 = vst.msk [vmem:[%s427 + $0x159] sm:$0xff] %vm349, %v1500
        %1533 = vst.msk [vmem:[%s427 + $0x169] sm:$0xff] %vm349, %v1501
        %1534 = vst.msk [vmem:[%s427 + $0x171] sm:$0xff] %vm349, %v1502
        %v1535 = vld [vmem:[#allocation9] sm:$0x7]
        %v1536 = vld [vmem:[#allocation9 + $0x4] sm:$0x7]
        %v1537 = vld [vmem:[#allocation9 + $0x8] sm:$0x7]
        %v1538 = vld [vmem:[#allocation2] sm:$0xff]
        %v1539 = vld [vmem:[#allocation2 + $0x8] sm:$0xff]
        %v1540 = vld [vmem:[#allocation2 + $0x18] sm:$0xff]
        %v1541 = vld [vmem:[#allocation2 + $0x20] sm:$0xff]
        %v1542 = vld [vmem:[#allocation2 + $0x30] sm:$0xff]
        %v1543 = vld [vmem:[#allocation2 + $0x38] sm:$0xff]
        %v1544 = vld [vmem:[#allocation2 + $0x48] sm:$0xff]
        %v1545 = vld [vmem:[#allocation2 + $0x50] sm:$0xff]
        %v1546 = vld [vmem:[#allocation2 + $0x60] sm:$0xff]
        %v1547 = vld [vmem:[#allocation2 + $0x68] sm:$0xff]
        %v1548 = vld [vmem:[#allocation2 + $0x78] sm:$0xff]
        %v1549 = vld [vmem:[#allocation2 + $0x80] sm:$0xff]
        %v1550 = vld [vmem:[#allocation2 + $0x90] sm:$0xff]
        %v1551 = vld [vmem:[#allocation2 + $0x98] sm:$0xff]
        %v1552 = vld [vmem:[#allocation2 + $0xa8] sm:$0xff]
        %v1553 = vld [vmem:[#allocation2 + $0xb0] sm:$0xff]
        %v1554 = vld [vmem:[#allocation2 + $0xc0] sm:$0xff]
        %v1555 = vld [vmem:[#allocation2 + $0xc8] sm:$0xff]
        %v1556 = vld [vmem:[#allocation2 + $0xd8] sm:$0xff]
        %v1557 = vld [vmem:[#allocation2 + $0xe0] sm:$0xff]
        %v1558 = vld [vmem:[#allocation2 + $0xf0] sm:$0xff]
        %v1559 = vld [vmem:[#allocation2 + $0xf8] sm:$0xff]
        %v1560 = vld [vmem:[#allocation2 + $0x108] sm:$0xff]
        %v1561 = vld [vmem:[#allocation2 + $0x110] sm:$0xff]
        %v1562 = vld [vmem:[#allocation2 + $0x120] sm:$0xff]
        %v1563 = vld [vmem:[#allocation2 + $0x128] sm:$0xff]
        %v1564 = vld [vmem:[#allocation2 + $0x138] sm:$0xff]
        %v1565 = vld [vmem:[#allocation2 + $0x140] sm:$0xff]
        %v1566 = vld [vmem:[#allocation2 + $0x150] sm:$0xff]
        %v1567 = vld [vmem:[#allocation2 + $0x158] sm:$0xff]
        %v1568 = vld [vmem:[#allocation2 + $0x168] sm:$0xff]
        %v1569 = vld [vmem:[#allocation2 + $0x170] sm:$0xff]
        %v1570 = vld [vmem:[#allocation2 + $0x180] sm:$0xff]
        %v1571 = vld [vmem:[#allocation2 + $0x188] sm:$0xff]
        %v1572 = vld [vmem:[#allocation2 + $0x198] sm:$0xff]
        %v1573 = vld [vmem:[#allocation2 + $0x1a0] sm:$0xff]
        %v1574 = vperm.slane %v1535, 0
        %v1575 = vmul.f32 %v1538, %v1574
        %v1576 = vmul.f32 %v1539, %v1574
        %v1577 = vmul.f32 %v1540, %v1574
        %v1578 = vmul.f32 %v1541, %v1574
        %v1579 = vmul.f32 %v1542, %v1574
        %v1580 = vmul.f32 %v1543, %v1574
        %v1581 = vmul.f32 %v1544, %v1574
        %v1582 = vmul.f32 %v1545, %v1574
        %v1583 = vmul.f32 %v1546, %v1574
        %v1584 = vmul.f32 %v1547, %v1574
        %v1585 = vmul.f32 %v1548, %v1574
        %v1586 = vmul.f32 %v1549, %v1574
        %v1587 = vmul.f32 %v1550, %v1574
        %v1588 = vmul.f32 %v1551, %v1574
        %v1589 = vmul.f32 %v1552, %v1574
        %v1590 = vmul.f32 %v1553, %v1574
        %v1591 = vmul.f32 %v1554, %v1574
        %v1592 = vmul.f32 %v1555, %v1574
        %v1593 = vmul.f32 %v1556, %v1574
        %v1594 = vmul.f32 %v1557, %v1574
        %v1595 = vmul.f32 %v1558, %v1574
        %v1596 = vmul.f32 %v1559, %v1574
        %v1597 = vmul.f32 %v1560, %v1574
        %v1598 = vmul.f32 %v1561, %v1574
        %v1599 = vmul.f32 %v1562, %v1574
        %v1600 = vmul.f32 %v1563, %v1574
        %v1601 = vmul.f32 %v1564, %v1574
        %v1602 = vmul.f32 %v1565, %v1574
        %v1603 = vmul.f32 %v1566, %v1574
        %v1604 = vmul.f32 %v1567, %v1574
        %v1605 = vmul.f32 %v1568, %v1574
        %v1606 = vmul.f32 %v1569, %v1574
        %v1607 = vperm.slane %v1536, 0
        %v1608 = vmul.f32 %v1540, %v1607
        %v1609 = vmul.f32 %v1541, %v1607
        %v1610 = vmul.f32 %v1542, %v1607
        %v1611 = vmul.f32 %v1543, %v1607
        %v1612 = vmul.f32 %v1544, %v1607
        %v1613 = vmul.f32 %v1545, %v1607
        %v1614 = vmul.f32 %v1546, %v1607
        %v1615 = vmul.f32 %v1547, %v1607
        %v1616 = vmul.f32 %v1548, %v1607
        %v1617 = vmul.f32 %v1549, %v1607
        %v1618 = vmul.f32 %v1550, %v1607
        %v1619 = vmul.f32 %v1551, %v1607
        %v1620 = vmul.f32 %v1552, %v1607
        %v1621 = vmul.f32 %v1553, %v1607
        %v1622 = vmul.f32 %v1554, %v1607
        %v1623 = vmul.f32 %v1555, %v1607
        %v1624 = vmul.f32 %v1556, %v1607
        %v1625 = vmul.f32 %v1557, %v1607
        %v1626 = vmul.f32 %v1558, %v1607
        %v1627 = vmul.f32 %v1559, %v1607
        %v1628 = vmul.f32 %v1560, %v1607
        %v1629 = vmul.f32 %v1561, %v1607
        %v1630 = vmul.f32 %v1562, %v1607
        %v1631 = vmul.f32 %v1563, %v1607
        %v1632 = vmul.f32 %v1564, %v1607
        %v1633 = vmul.f32 %v1565, %v1607
        %v1634 = vmul.f32 %v1566, %v1607
        %v1635 = vmul.f32 %v1567, %v1607
        %v1636 = vmul.f32 %v1568, %v1607
        %v1637 = vmul.f32 %v1569, %v1607
        %v1638 = vmul.f32 %v1570, %v1607
        %v1639 = vmul.f32 %v1571, %v1607
        %v1640 = vadd.f32 %v1575, %v1608
        %v1641 = vadd.f32 %v1576, %v1609
        %v1642 = vadd.f32 %v1577, %v1610
        %v1643 = vadd.f32 %v1578, %v1611
        %v1644 = vadd.f32 %v1579, %v1612
        %v1645 = vadd.f32 %v1580, %v1613
        %v1646 = vadd.f32 %v1581, %v1614
        %v1647 = vadd.f32 %v1582, %v1615
        %v1648 = vadd.f32 %v1583, %v1616
        %v1649 = vadd.f32 %v1584, %v1617
        %v1650 = vadd.f32 %v1585, %v1618
        %v1651 = vadd.f32 %v1586, %v1619
        %v1652 = vadd.f32 %v1587, %v1620
        %v1653 = vadd.f32 %v1588, %v1621
        %v1654 = vadd.f32 %v1589, %v1622
        %v1655 = vadd.f32 %v1590, %v1623
        %v1656 = vadd.f32 %v1591, %v1624
        %v1657 = vadd.f32 %v1592, %v1625
        %v1658 = vadd.f32 %v1593, %v1626
        %v1659 = vadd.f32 %v1594, %v1627
        %v1660 = vadd.f32 %v1595, %v1628
        %v1661 = vadd.f32 %v1596, %v1629
        %v1662 = vadd.f32 %v1597, %v1630
        %v1663 = vadd.f32 %v1598, %v1631
        %v1664 = vadd.f32 %v1599, %v1632
        %v1665 = vadd.f32 %v1600, %v1633
        %v1666 = vadd.f32 %v1601, %v1634
        %v1667 = vadd.f32 %v1602, %v1635
        %v1668 = vadd.f32 %v1603, %v1636
        %v1669 = vadd.f32 %v1604, %v1637
        %v1670 = vadd.f32 %v1605, %v1638
        %v1671 = vadd.f32 %v1606, %v1639
        %v1672 = vperm.slane %v1537, 0
        %v1673 = vmul.f32 %v1542, %v1672
        %v1674 = vmul.f32 %v1543, %v1672
        %v1675 = vmul.f32 %v1544, %v1672
        %v1676 = vmul.f32 %v1545, %v1672
        %v1677 = vmul.f32 %v1546, %v1672
        %v1678 = vmul.f32 %v1547, %v1672
        %v1679 = vmul.f32 %v1548, %v1672
        %v1680 = vmul.f32 %v1549, %v1672
        %v1681 = vmul.f32 %v1550, %v1672
        %v1682 = vmul.f32 %v1551, %v1672
        %v1683 = vmul.f32 %v1552, %v1672
        %v1684 = vmul.f32 %v1553, %v1672
        %v1685 = vmul.f32 %v1554, %v1672
        %v1686 = vmul.f32 %v1555, %v1672
        %v1687 = vmul.f32 %v1556, %v1672
        %v1688 = vmul.f32 %v1557, %v1672
        %v1689 = vmul.f32 %v1558, %v1672
        %v1690 = vmul.f32 %v1559, %v1672
        %v1691 = vmul.f32 %v1560, %v1672
        %v1692 = vmul.f32 %v1561, %v1672
        %v1693 = vmul.f32 %v1562, %v1672
        %v1694 = vmul.f32 %v1563, %v1672
        %v1695 = vmul.f32 %v1564, %v1672
        %v1696 = vmul.f32 %v1565, %v1672
        %v1697 = vmul.f32 %v1566, %v1672
        %v1698 = vmul.f32 %v1567, %v1672
        %v1699 = vmul.f32 %v1568, %v1672
        %v1700 = vmul.f32 %v1569, %v1672
        %v1701 = vmul.f32 %v1570, %v1672
        %v1702 = vmul.f32 %v1571, %v1672
        %v1703 = vmul.f32 %v1572, %v1672
        %v1704 = vmul.f32 %v1573, %v1672
        %v1705 = vadd.f32 %v1640, %v1673
        %v1706 = vadd.f32 %v1641, %v1674
        %v1707 = vadd.f32 %v1642, %v1675
        %v1708 = vadd.f32 %v1643, %v1676
        %v1709 = vadd.f32 %v1644, %v1677
        %v1710 = vadd.f32 %v1645, %v1678
        %v1711 = vadd.f32 %v1646, %v1679
        %v1712 = vadd.f32 %v1647, %v1680
        %v1713 = vadd.f32 %v1648, %v1681
        %v1714 = vadd.f32 %v1649, %v1682
        %v1715 = vadd.f32 %v1650, %v1683
        %v1716 = vadd.f32 %v1651, %v1684
        %v1717 = vadd.f32 %v1652, %v1685
        %v1718 = vadd.f32 %v1653, %v1686
        %v1719 = vadd.f32 %v1654, %v1687
        %v1720 = vadd.f32 %v1655, %v1688
        %v1721 = vadd.f32 %v1656, %v1689
        %v1722 = vadd.f32 %v1657, %v1690
        %v1723 = vadd.f32 %v1658, %v1691
        %v1724 = vadd.f32 %v1659, %v1692
        %v1725 = vadd.f32 %v1660, %v1693
        %v1726 = vadd.f32 %v1661, %v1694
        %v1727 = vadd.f32 %v1662, %v1695
        %v1728 = vadd.f32 %v1663, %v1696
        %v1729 = vadd.f32 %v1664, %v1697
        %v1730 = vadd.f32 %v1665, %v1698
        %v1731 = vadd.f32 %v1666, %v1699
        %v1732 = vadd.f32 %v1667, %v1700
        %v1733 = vadd.f32 %v1668, %v1701
        %v1734 = vadd.f32 %v1669, %v1702
        %v1735 = vadd.f32 %v1670, %v1703
        %v1736 = vadd.f32 %v1671, %v1704
        %v1737 = vld [vmem:[#allocation2 + $0x1] sm:$0xff]
        %v1738 = vld [vmem:[#allocation2 + $0x9] sm:$0xff]
        %v1739 = vld [vmem:[#allocation2 + $0x19] sm:$0xff]
        %v1740 = vld [vmem:[#allocation2 + $0x21] sm:$0xff]
        %v1741 = vld [vmem:[#allocation2 + $0x31] sm:$0xff]
        %v1742 = vld [vmem:[#allocation2 + $0x39] sm:$0xff]
        %v1743 = vld [vmem:[#allocation2 + $0x49] sm:$0xff]
        %v1744 = vld [vmem:[#allocation2 + $0x51] sm:$0xff]
        %v1745 = vld [vmem:[#allocation2 + $0x61] sm:$0xff]
        %v1746 = vld [vmem:[#allocation2 + $0x69] sm:$0xff]
        %v1747 = vld [vmem:[#allocation2 + $0x79] sm:$0xff]
        %v1748 = vld [vmem:[#allocation2 + $0x81] sm:$0xff]
        %v1749 = vld [vmem:[#allocation2 + $0x91] sm:$0xff]
        %v1750 = vld [vmem:[#allocation2 + $0x99] sm:$0xff]
        %v1751 = vld [vmem:[#allocation2 + $0xa9] sm:$0xff]
        %v1752 = vld [vmem:[#allocation2 + $0xb1] sm:$0xff]
        %v1753 = vld [vmem:[#allocation2 + $0xc1] sm:$0xff]
        %v1754 = vld [vmem:[#allocation2 + $0xc9] sm:$0xff]
        %v1755 = vld [vmem:[#allocation2 + $0xd9] sm:$0xff]
        %v1756 = vld [vmem:[#allocation2 + $0xe1] sm:$0xff]
        %v1757 = vld [vmem:[#allocation2 + $0xf1] sm:$0xff]
        %v1758 = vld [vmem:[#allocation2 + $0xf9] sm:$0xff]
        %v1759 = vld [vmem:[#allocation2 + $0x109] sm:$0xff]
        %v1760 = vld [vmem:[#allocation2 + $0x111] sm:$0xff]
        %v1761 = vld [vmem:[#allocation2 + $0x121] sm:$0xff]
        %v1762 = vld [vmem:[#allocation2 + $0x129] sm:$0xff]
        %v1763 = vld [vmem:[#allocation2 + $0x139] sm:$0xff]
        %v1764 = vld [vmem:[#allocation2 + $0x141] sm:$0xff]
        %v1765 = vld [vmem:[#allocation2 + $0x151] sm:$0xff]
        %v1766 = vld [vmem:[#allocation2 + $0x159] sm:$0xff]
        %v1767 = vld [vmem:[#allocation2 + $0x169] sm:$0xff]
        %v1768 = vld [vmem:[#allocation2 + $0x171] sm:$0xff]
        %v1769 = vld [vmem:[#allocation2 + $0x181] sm:$0xff]
        %v1770 = vld [vmem:[#allocation2 + $0x189] sm:$0xff]
        %v1771 = vld [vmem:[#allocation2 + $0x199] sm:$0xff]
        %v1772 = vld [vmem:[#allocation2 + $0x1a1] sm:$0xff]
        %v1773 = vperm.slane %v1535, 1
        %v1774 = vmul.f32 %v1737, %v1773
        %v1775 = vmul.f32 %v1738, %v1773
        %v1776 = vmul.f32 %v1739, %v1773
        %v1777 = vmul.f32 %v1740, %v1773
        %v1778 = vmul.f32 %v1741, %v1773
        %v1779 = vmul.f32 %v1742, %v1773
        %v1780 = vmul.f32 %v1743, %v1773
        %v1781 = vmul.f32 %v1744, %v1773
        %v1782 = vmul.f32 %v1745, %v1773
        %v1783 = vmul.f32 %v1746, %v1773
        %v1784 = vmul.f32 %v1747, %v1773
        %v1785 = vmul.f32 %v1748, %v1773
        %v1786 = vmul.f32 %v1749, %v1773
        %v1787 = vmul.f32 %v1750, %v1773
        %v1788 = vmul.f32 %v1751, %v1773
        %v1789 = vmul.f32 %v1752, %v1773
        %v1790 = vmul.f32 %v1753, %v1773
        %v1791 = vmul.f32 %v1754, %v1773
        %v1792 = vmul.f32 %v1755, %v1773
        %v1793 = vmul.f32 %v1756, %v1773
        %v1794 = vmul.f32 %v1757, %v1773
        %v1795 = vmul.f32 %v1758, %v1773
        %v1796 = vmul.f32 %v1759, %v1773
        %v1797 = vmul.f32 %v1760, %v1773
        %v1798 = vmul.f32 %v1761, %v1773
        %v1799 = vmul.f32 %v1762, %v1773
        %v1800 = vmul.f32 %v1763, %v1773
        %v1801 = vmul.f32 %v1764, %v1773
        %v1802 = vmul.f32 %v1765, %v1773
        %v1803 = vmul.f32 %v1766, %v1773
        %v1804 = vmul.f32 %v1767, %v1773
        %v1805 = vmul.f32 %v1768, %v1773
        %v1806 = vadd.f32 %v1705, %v1774
        %v1807 = vadd.f32 %v1706, %v1775
        %v1808 = vadd.f32 %v1707, %v1776
        %v1809 = vadd.f32 %v1708, %v1777
        %v1810 = vadd.f32 %v1709, %v1778
        %v1811 = vadd.f32 %v1710, %v1779
        %v1812 = vadd.f32 %v1711, %v1780
        %v1813 = vadd.f32 %v1712, %v1781
        %v1814 = vadd.f32 %v1713, %v1782
        %v1815 = vadd.f32 %v1714, %v1783
        %v1816 = vadd.f32 %v1715, %v1784
        %v1817 = vadd.f32 %v1716, %v1785
        %v1818 = vadd.f32 %v1717, %v1786
        %v1819 = vadd.f32 %v1718, %v1787
        %v1820 = vadd.f32 %v1719, %v1788
        %v1821 = vadd.f32 %v1720, %v1789
        %v1822 = vadd.f32 %v1721, %v1790
        %v1823 = vadd.f32 %v1722, %v1791
        %v1824 = vadd.f32 %v1723, %v1792
        %v1825 = vadd.f32 %v1724, %v1793
        %v1826 = vadd.f32 %v1725, %v1794
        %v1827 = vadd.f32 %v1726, %v1795
        %v1828 = vadd.f32 %v1727, %v1796
        %v1829 = vadd.f32 %v1728, %v1797
        %v1830 = vadd.f32 %v1729, %v1798
        %v1831 = vadd.f32 %v1730, %v1799
        %v1832 = vadd.f32 %v1731, %v1800
        %v1833 = vadd.f32 %v1732, %v1801
        %v1834 = vadd.f32 %v1733, %v1802
        %v1835 = vadd.f32 %v1734, %v1803
        %v1836 = vadd.f32 %v1735, %v1804
        %v1837 = vadd.f32 %v1736, %v1805
        %v1838 = vperm.slane %v1536, 1
        %v1839 = vmul.f32 %v1739, %v1838
        %v1840 = vmul.f32 %v1740, %v1838
        %v1841 = vmul.f32 %v1741, %v1838
        %v1842 = vmul.f32 %v1742, %v1838
        %v1843 = vmul.f32 %v1743, %v1838
        %v1844 = vmul.f32 %v1744, %v1838
        %v1845 = vmul.f32 %v1745, %v1838
        %v1846 = vmul.f32 %v1746, %v1838
        %v1847 = vmul.f32 %v1747, %v1838
        %v1848 = vmul.f32 %v1748, %v1838
        %v1849 = vmul.f32 %v1749, %v1838
        %v1850 = vmul.f32 %v1750, %v1838
        %v1851 = vmul.f32 %v1751, %v1838
        %v1852 = vmul.f32 %v1752, %v1838
        %v1853 = vmul.f32 %v1753, %v1838
        %v1854 = vmul.f32 %v1754, %v1838
        %v1855 = vmul.f32 %v1755, %v1838
        %v1856 = vmul.f32 %v1756, %v1838
        %v1857 = vmul.f32 %v1757, %v1838
        %v1858 = vmul.f32 %v1758, %v1838
        %v1859 = vmul.f32 %v1759, %v1838
        %v1860 = vmul.f32 %v1760, %v1838
        %v1861 = vmul.f32 %v1761, %v1838
        %v1862 = vmul.f32 %v1762, %v1838
        %v1863 = vmul.f32 %v1763, %v1838
        %v1864 = vmul.f32 %v1764, %v1838
        %v1865 = vmul.f32 %v1765, %v1838
        %v1866 = vmul.f32 %v1766, %v1838
        %v1867 = vmul.f32 %v1767, %v1838
        %v1868 = vmul.f32 %v1768, %v1838
        %v1869 = vmul.f32 %v1769, %v1838
        %v1870 = vmul.f32 %v1770, %v1838
        %v1871 = vadd.f32 %v1806, %v1839
        %v1872 = vadd.f32 %v1807, %v1840
        %v1873 = vadd.f32 %v1808, %v1841
        %v1874 = vadd.f32 %v1809, %v1842
        %v1875 = vadd.f32 %v1810, %v1843
        %v1876 = vadd.f32 %v1811, %v1844
        %v1877 = vadd.f32 %v1812, %v1845
        %v1878 = vadd.f32 %v1813, %v1846
        %v1879 = vadd.f32 %v1814, %v1847
        %v1880 = vadd.f32 %v1815, %v1848
        %v1881 = vadd.f32 %v1816, %v1849
        %v1882 = vadd.f32 %v1817, %v1850
        %v1883 = vadd.f32 %v1818, %v1851
        %v1884 = vadd.f32 %v1819, %v1852
        %v1885 = vadd.f32 %v1820, %v1853
        %v1886 = vadd.f32 %v1821, %v1854
        %v1887 = vadd.f32 %v1822, %v1855
        %v1888 = vadd.f32 %v1823, %v1856
        %v1889 = vadd.f32 %v1824, %v1857
        %v1890 = vadd.f32 %v1825, %v1858
        %v1891 = vadd.f32 %v1826, %v1859
        %v1892 = vadd.f32 %v1827, %v1860
        %v1893 = vadd.f32 %v1828, %v1861
        %v1894 = vadd.f32 %v1829, %v1862
        %v1895 = vadd.f32 %v1830, %v1863
        %v1896 = vadd.f32 %v1831, %v1864
        %v1897 = vadd.f32 %v1832, %v1865
        %v1898 = vadd.f32 %v1833, %v1866
        %v1899 = vadd.f32 %v1834, %v1867
        %v1900 = vadd.f32 %v1835, %v1868
        %v1901 = vadd.f32 %v1836, %v1869
        %v1902 = vadd.f32 %v1837, %v1870
        %v1903 = vperm.slane %v1537, 1
        %v1904 = vmul.f32 %v1741, %v1903
        %v1905 = vmul.f32 %v1742, %v1903
        %v1906 = vmul.f32 %v1743, %v1903
        %v1907 = vmul.f32 %v1744, %v1903
        %v1908 = vmul.f32 %v1745, %v1903
        %v1909 = vmul.f32 %v1746, %v1903
        %v1910 = vmul.f32 %v1747, %v1903
        %v1911 = vmul.f32 %v1748, %v1903
        %v1912 = vmul.f32 %v1749, %v1903
        %v1913 = vmul.f32 %v1750, %v1903
        %v1914 = vmul.f32 %v1751, %v1903
        %v1915 = vmul.f32 %v1752, %v1903
        %v1916 = vmul.f32 %v1753, %v1903
        %v1917 = vmul.f32 %v1754, %v1903
        %v1918 = vmul.f32 %v1755, %v1903
        %v1919 = vmul.f32 %v1756, %v1903
        %v1920 = vmul.f32 %v1757, %v1903
        %v1921 = vmul.f32 %v1758, %v1903
        %v1922 = vmul.f32 %v1759, %v1903
        %v1923 = vmul.f32 %v1760, %v1903
        %v1924 = vmul.f32 %v1761, %v1903
        %v1925 = vmul.f32 %v1762, %v1903
        %v1926 = vmul.f32 %v1763, %v1903
        %v1927 = vmul.f32 %v1764, %v1903
        %v1928 = vmul.f32 %v1765, %v1903
        %v1929 = vmul.f32 %v1766, %v1903
        %v1930 = vmul.f32 %v1767, %v1903
        %v1931 = vmul.f32 %v1768, %v1903
        %v1932 = vmul.f32 %v1769, %v1903
        %v1933 = vmul.f32 %v1770, %v1903
        %v1934 = vmul.f32 %v1771, %v1903
        %v1935 = vmul.f32 %v1772, %v1903
        %v1936 = vadd.f32 %v1871, %v1904
        %v1937 = vadd.f32 %v1872, %v1905
        %v1938 = vadd.f32 %v1873, %v1906
        %v1939 = vadd.f32 %v1874, %v1907
        %v1940 = vadd.f32 %v1875, %v1908
        %v1941 = vadd.f32 %v1876, %v1909
        %v1942 = vadd.f32 %v1877, %v1910
        %v1943 = vadd.f32 %v1878, %v1911
        %v1944 = vadd.f32 %v1879, %v1912
        %v1945 = vadd.f32 %v1880, %v1913
        %v1946 = vadd.f32 %v1881, %v1914
        %v1947 = vadd.f32 %v1882, %v1915
        %v1948 = vadd.f32 %v1883, %v1916
        %v1949 = vadd.f32 %v1884, %v1917
        %v1950 = vadd.f32 %v1885, %v1918
        %v1951 = vadd.f32 %v1886, %v1919
        %v1952 = vadd.f32 %v1887, %v1920
        %v1953 = vadd.f32 %v1888, %v1921
        %v1954 = vadd.f32 %v1889, %v1922
        %v1955 = vadd.f32 %v1890, %v1923
        %v1956 = vadd.f32 %v1891, %v1924
        %v1957 = vadd.f32 %v1892, %v1925
        %v1958 = vadd.f32 %v1893, %v1926
        %v1959 = vadd.f32 %v1894, %v1927
        %v1960 = vadd.f32 %v1895, %v1928
        %v1961 = vadd.f32 %v1896, %v1929
        %v1962 = vadd.f32 %v1897, %v1930
        %v1963 = vadd.f32 %v1898, %v1931
        %v1964 = vadd.f32 %v1899, %v1932
        %v1965 = vadd.f32 %v1900, %v1933
        %v1966 = vadd.f32 %v1901, %v1934
        %v1967 = vadd.f32 %v1902, %v1935
        %v1968 = vld [vmem:[#allocation2 + $0x2] sm:$0xff]
        %v1969 = vld [vmem:[#allocation2 + $0xa] sm:$0xff]
        %v1970 = vld [vmem:[#allocation2 + $0x1a] sm:$0xff]
        %v1971 = vld [vmem:[#allocation2 + $0x22] sm:$0xff]
        %v1972 = vld [vmem:[#allocation2 + $0x32] sm:$0xff]
        %v1973 = vld [vmem:[#allocation2 + $0x3a] sm:$0xff]
        %v1974 = vld [vmem:[#allocation2 + $0x4a] sm:$0xff]
        %v1975 = vld [vmem:[#allocation2 + $0x52] sm:$0xff]
        %v1976 = vld [vmem:[#allocation2 + $0x62] sm:$0xff]
        %v1977 = vld [vmem:[#allocation2 + $0x6a] sm:$0xff]
        %v1978 = vld [vmem:[#allocation2 + $0x7a] sm:$0xff]
        %v1979 = vld [vmem:[#allocation2 + $0x82] sm:$0xff]
        %v1980 = vld [vmem:[#allocation2 + $0x92] sm:$0xff]
        %v1981 = vld [vmem:[#allocation2 + $0x9a] sm:$0xff]
        %v1982 = vld [vmem:[#allocation2 + $0xaa] sm:$0xff]
        %v1983 = vld [vmem:[#allocation2 + $0xb2] sm:$0xff]
        %v1984 = vld [vmem:[#allocation2 + $0xc2] sm:$0xff]
        %v1985 = vld [vmem:[#allocation2 + $0xca] sm:$0xff]
        %v1986 = vld [vmem:[#allocation2 + $0xda] sm:$0xff]
        %v1987 = vld [vmem:[#allocation2 + $0xe2] sm:$0xff]
        %v1988 = vld [vmem:[#allocation2 + $0xf2] sm:$0xff]
        %v1989 = vld [vmem:[#allocation2 + $0xfa] sm:$0xff]
        %v1990 = vld [vmem:[#allocation2 + $0x10a] sm:$0xff]
        %v1991 = vld [vmem:[#allocation2 + $0x112] sm:$0xff]
        %v1992 = vld [vmem:[#allocation2 + $0x122] sm:$0xff]
        %v1993 = vld [vmem:[#allocation2 + $0x12a] sm:$0xff]
        %v1994 = vld [vmem:[#allocation2 + $0x13a] sm:$0xff]
        %v1995 = vld [vmem:[#allocation2 + $0x142] sm:$0xff]
        %v1996 = vld [vmem:[#allocation2 + $0x152] sm:$0xff]
        %v1997 = vld [vmem:[#allocation2 + $0x15a] sm:$0xff]
        %v1998 = vld [vmem:[#allocation2 + $0x16a] sm:$0xff]
        %v1999 = vld [vmem:[#allocation2 + $0x172] sm:$0xff]
        %v2000 = vld [vmem:[#allocation2 + $0x182] sm:$0xff]
        %v2001 = vld [vmem:[#allocation2 + $0x18a] sm:$0xff]
        %v2002 = vld [vmem:[#allocation2 + $0x19a] sm:$0xff]
        %v2003 = vld [vmem:[#allocation2 + $0x1a2] sm:$0xff]
        %v2004 = vperm.slane %v1535, 2
        %v2005 = vmul.f32 %v1968, %v2004
        %v2006 = vmul.f32 %v1969, %v2004
        %v2007 = vmul.f32 %v1970, %v2004
        %v2008 = vmul.f32 %v1971, %v2004
        %v2009 = vmul.f32 %v1972, %v2004
        %v2010 = vmul.f32 %v1973, %v2004
        %v2011 = vmul.f32 %v1974, %v2004
        %v2012 = vmul.f32 %v1975, %v2004
        %v2013 = vmul.f32 %v1976, %v2004
        %v2014 = vmul.f32 %v1977, %v2004
        %v2015 = vmul.f32 %v1978, %v2004
        %v2016 = vmul.f32 %v1979, %v2004
        %v2017 = vmul.f32 %v1980, %v2004
        %v2018 = vmul.f32 %v1981, %v2004
        %v2019 = vmul.f32 %v1982, %v2004
        %v2020 = vmul.f32 %v1983, %v2004
        %v2021 = vmul.f32 %v1984, %v2004
        %v2022 = vmul.f32 %v1985, %v2004
        %v2023 = vmul.f32 %v1986, %v2004
        %v2024 = vmul.f32 %v1987, %v2004
        %v2025 = vmul.f32 %v1988, %v2004
        %v2026 = vmul.f32 %v1989, %v2004
        %v2027 = vmul.f32 %v1990, %v2004
        %v2028 = vmul.f32 %v1991, %v2004
        %v2029 = vmul.f32 %v1992, %v2004
        %v2030 = vmul.f32 %v1993, %v2004
        %v2031 = vmul.f32 %v1994, %v2004
        %v2032 = vmul.f32 %v1995, %v2004
        %v2033 = vmul.f32 %v1996, %v2004
        %v2034 = vmul.f32 %v1997, %v2004
        %v2035 = vmul.f32 %v1998, %v2004
        %v2036 = vmul.f32 %v1999, %v2004
        %v2037 = vadd.f32 %v1936, %v2005
        %v2038 = vadd.f32 %v1937, %v2006
        %v2039 = vadd.f32 %v1938, %v2007
        %v2040 = vadd.f32 %v1939, %v2008
        %v2041 = vadd.f32 %v1940, %v2009
        %v2042 = vadd.f32 %v1941, %v2010
        %v2043 = vadd.f32 %v1942, %v2011
        %v2044 = vadd.f32 %v1943, %v2012
        %v2045 = vadd.f32 %v1944, %v2013
        %v2046 = vadd.f32 %v1945, %v2014
        %v2047 = vadd.f32 %v1946, %v2015
        %v2048 = vadd.f32 %v1947, %v2016
        %v2049 = vadd.f32 %v1948, %v2017
        %v2050 = vadd.f32 %v1949, %v2018
        %v2051 = vadd.f32 %v1950, %v2019
        %v2052 = vadd.f32 %v1951, %v2020
        %v2053 = vadd.f32 %v1952, %v2021
        %v2054 = vadd.f32 %v1953, %v2022
        %v2055 = vadd.f32 %v1954, %v2023
        %v2056 = vadd.f32 %v1955, %v2024
        %v2057 = vadd.f32 %v1956, %v2025
        %v2058 = vadd.f32 %v1957, %v2026
        %v2059 = vadd.f32 %v1958, %v2027
        %v2060 = vadd.f32 %v1959, %v2028
        %v2061 = vadd.f32 %v1960, %v2029
        %v2062 = vadd.f32 %v1961, %v2030
        %v2063 = vadd.f32 %v1962, %v2031
        %v2064 = vadd.f32 %v1963, %v2032
        %v2065 = vadd.f32 %v1964, %v2033
        %v2066 = vadd.f32 %v1965, %v2034
        %v2067 = vadd.f32 %v1966, %v2035
        %v2068 = vadd.f32 %v1967, %v2036
        %v2069 = vperm.slane %v1536, 2
        %v2070 = vmul.f32 %v1970, %v2069
        %v2071 = vmul.f32 %v1971, %v2069
        %v2072 = vmul.f32 %v1972, %v2069
        %v2073 = vmul.f32 %v1973, %v2069
        %v2074 = vmul.f32 %v1974, %v2069
        %v2075 = vmul.f32 %v1975, %v2069
        %v2076 = vmul.f32 %v1976, %v2069
        %v2077 = vmul.f32 %v1977, %v2069
        %v2078 = vmul.f32 %v1978, %v2069
        %v2079 = vmul.f32 %v1979, %v2069
        %v2080 = vmul.f32 %v1980, %v2069
        %v2081 = vmul.f32 %v1981, %v2069
        %v2082 = vmul.f32 %v1982, %v2069
        %v2083 = vmul.f32 %v1983, %v2069
        %v2084 = vmul.f32 %v1984, %v2069
        %v2085 = vmul.f32 %v1985, %v2069
        %v2086 = vmul.f32 %v1986, %v2069
        %v2087 = vmul.f32 %v1987, %v2069
        %v2088 = vmul.f32 %v1988, %v2069
        %v2089 = vmul.f32 %v1989, %v2069
        %v2090 = vmul.f32 %v1990, %v2069
        %v2091 = vmul.f32 %v1991, %v2069
        %v2092 = vmul.f32 %v1992, %v2069
        %v2093 = vmul.f32 %v1993, %v2069
        %v2094 = vmul.f32 %v1994, %v2069
        %v2095 = vmul.f32 %v1995, %v2069
        %v2096 = vmul.f32 %v1996, %v2069
        %v2097 = vmul.f32 %v1997, %v2069
        %v2098 = vmul.f32 %v1998, %v2069
        %v2099 = vmul.f32 %v1999, %v2069
        %v2100 = vmul.f32 %v2000, %v2069
        %v2101 = vmul.f32 %v2001, %v2069
        %v2102 = vadd.f32 %v2037, %v2070
        %v2103 = vadd.f32 %v2038, %v2071
        %v2104 = vadd.f32 %v2039, %v2072
        %v2105 = vadd.f32 %v2040, %v2073
        %v2106 = vadd.f32 %v2041, %v2074
        %v2107 = vadd.f32 %v2042, %v2075
        %v2108 = vadd.f32 %v2043, %v2076
        %v2109 = vadd.f32 %v2044, %v2077
        %v2110 = vadd.f32 %v2045, %v2078
        %v2111 = vadd.f32 %v2046, %v2079
        %v2112 = vadd.f32 %v2047, %v2080
        %v2113 = vadd.f32 %v2048, %v2081
        %v2114 = vadd.f32 %v2049, %v2082
        %v2115 = vadd.f32 %v2050, %v2083
        %v2116 = vadd.f32 %v2051, %v2084
        %v2117 = vadd.f32 %v2052, %v2085
        %v2118 = vadd.f32 %v2053, %v2086
        %v2119 = vadd.f32 %v2054, %v2087
        %v2120 = vadd.f32 %v2055, %v2088
        %v2121 = vadd.f32 %v2056, %v2089
        %v2122 = vadd.f32 %v2057, %v2090
        %v2123 = vadd.f32 %v2058, %v2091
        %v2124 = vadd.f32 %v2059, %v2092
        %v2125 = vadd.f32 %v2060, %v2093
        %v2126 = vadd.f32 %v2061, %v2094
        %v2127 = vadd.f32 %v2062, %v2095
        %v2128 = vadd.f32 %v2063, %v2096
        %v2129 = vadd.f32 %v2064, %v2097
        %v2130 = vadd.f32 %v2065, %v2098
        %v2131 = vadd.f32 %v2066, %v2099
        %v2132 = vadd.f32 %v2067, %v2100
        %v2133 = vadd.f32 %v2068, %v2101
        %v2134 = vperm.slane %v1537, 2
        %v2135 = vmul.f32 %v1972, %v2134
        %v2136 = vmul.f32 %v1973, %v2134
        %v2137 = vmul.f32 %v1974, %v2134
        %v2138 = vmul.f32 %v1975, %v2134
        %v2139 = vmul.f32 %v1976, %v2134
        %v2140 = vmul.f32 %v1977, %v2134
        %v2141 = vmul.f32 %v1978, %v2134
        %v2142 = vmul.f32 %v1979, %v2134
        %v2143 = vmul.f32 %v1980, %v2134
        %v2144 = vmul.f32 %v1981, %v2134
        %v2145 = vmul.f32 %v1982, %v2134
        %v2146 = vmul.f32 %v1983, %v2134
        %v2147 = vmul.f32 %v1984, %v2134
        %v2148 = vmul.f32 %v1985, %v2134
        %v2149 = vmul.f32 %v1986, %v2134
        %v2150 = vmul.f32 %v1987, %v2134
        %v2151 = vmul.f32 %v1988, %v2134
        %v2152 = vmul.f32 %v1989, %v2134
        %v2153 = vmul.f32 %v1990, %v2134
        %v2154 = vmul.f32 %v1991, %v2134
        %v2155 = vmul.f32 %v1992, %v2134
        %v2156 = vmul.f32 %v1993, %v2134
        %v2157 = vmul.f32 %v1994, %v2134
        %v2158 = vmul.f32 %v1995, %v2134
        %v2159 = vmul.f32 %v1996, %v2134
        %v2160 = vmul.f32 %v1997, %v2134
        %v2161 = vmul.f32 %v1998, %v2134
        %v2162 = vmul.f32 %v1999, %v2134
        %v2163 = vmul.f32 %v2000, %v2134
        %v2164 = vmul.f32 %v2001, %v2134
        %v2165 = vmul.f32 %v2002, %v2134
        %v2166 = vmul.f32 %v2003, %v2134
        %v2167 = vadd.f32 %v2102, %v2135
        %v2168 = vadd.f32 %v2103, %v2136
        %v2169 = vadd.f32 %v2104, %v2137
        %v2170 = vadd.f32 %v2105, %v2138
        %v2171 = vadd.f32 %v2106, %v2139
        %v2172 = vadd.f32 %v2107, %v2140
        %v2173 = vadd.f32 %v2108, %v2141
        %v2174 = vadd.f32 %v2109, %v2142
        %v2175 = vadd.f32 %v2110, %v2143
        %v2176 = vadd.f32 %v2111, %v2144
        %v2177 = vadd.f32 %v2112, %v2145
        %v2178 = vadd.f32 %v2113, %v2146
        %v2179 = vadd.f32 %v2114, %v2147
        %v2180 = vadd.f32 %v2115, %v2148
        %v2181 = vadd.f32 %v2116, %v2149
        %v2182 = vadd.f32 %v2117, %v2150
        %v2183 = vadd.f32 %v2118, %v2151
        %v2184 = vadd.f32 %v2119, %v2152
        %v2185 = vadd.f32 %v2120, %v2153
        %v2186 = vadd.f32 %v2121, %v2154
        %v2187 = vadd.f32 %v2122, %v2155
        %v2188 = vadd.f32 %v2123, %v2156
        %v2189 = vadd.f32 %v2124, %v2157
        %v2190 = vadd.f32 %v2125, %v2158
        %v2191 = vadd.f32 %v2126, %v2159
        %v2192 = vadd.f32 %v2127, %v2160
        %v2193 = vadd.f32 %v2128, %v2161
        %v2194 = vadd.f32 %v2129, %v2162
        %v2195 = vadd.f32 %v2130, %v2163
        %v2196 = vadd.f32 %v2131, %v2164
        %v2197 = vadd.f32 %v2132, %v2165
        %v2198 = vadd.f32 %v2133, %v2166
        %v2199 = vld [vmem:[%s6] sm:$0x1]
        %v2201 = vperm.slane %v2199, 0
        %v2203 = vadd.f32 %v2167, %v2201
        %v2204 = vadd.f32 %v2168, %v2201
        %v2205 = vadd.f32 %v2169, %v2201
        %v2206 = vadd.f32 %v2170, %v2201
        %v2207 = vadd.f32 %v2171, %v2201
        %v2208 = vadd.f32 %v2172, %v2201
        %v2209 = vadd.f32 %v2173, %v2201
        %v2210 = vadd.f32 %v2174, %v2201
        %v2211 = vadd.f32 %v2175, %v2201
        %v2212 = vadd.f32 %v2176, %v2201
        %v2213 = vadd.f32 %v2177, %v2201
        %v2214 = vadd.f32 %v2178, %v2201
        %v2215 = vadd.f32 %v2179, %v2201
        %v2216 = vadd.f32 %v2180, %v2201
        %v2217 = vadd.f32 %v2181, %v2201
        %v2218 = vadd.f32 %v2182, %v2201
        %v2219 = vadd.f32 %v2183, %v2201
        %v2220 = vadd.f32 %v2184, %v2201
        %v2221 = vadd.f32 %v2185, %v2201
        %v2222 = vadd.f32 %v2186, %v2201
        %v2223 = vadd.f32 %v2187, %v2201
        %v2224 = vadd.f32 %v2188, %v2201
        %v2225 = vadd.f32 %v2189, %v2201
        %v2226 = vadd.f32 %v2190, %v2201
        %v2227 = vadd.f32 %v2191, %v2201
        %v2228 = vadd.f32 %v2192, %v2201
        %v2229 = vadd.f32 %v2193, %v2201
        %v2230 = vadd.f32 %v2194, %v2201
        %v2231 = vadd.f32 %v2195, %v2201
        %v2232 = vadd.f32 %v2196, %v2201
        %v2233 = vadd.f32 %v2197, %v2201
        %v2234 = vadd.f32 %v2198, %v2201
        %v2235 = vld [vmem:[%s302] sm:$0xff]
        %v2236 = vld [vmem:[%s302 + $0x8] sm:$0xff]
        %v2237 = vld [vmem:[%s302 + $0x10] sm:$0xff]
        %v2238 = vld [vmem:[%s302 + $0x18] sm:$0xff]
        %v2239 = vld [vmem:[%s302 + $0x20] sm:$0xff]
        %v2240 = vld [vmem:[%s302 + $0x28] sm:$0xff]
        %v2241 = vld [vmem:[%s302 + $0x30] sm:$0xff]
        %v2242 = vld [vmem:[%s302 + $0x38] sm:$0xff]
        %v2243 = vld [vmem:[%s302 + $0x40] sm:$0xff]
        %v2244 = vld [vmem:[%s302 + $0x48] sm:$0xff]
        %v2245 = vld [vmem:[%s302 + $0x50] sm:$0xff]
        %v2246 = vld [vmem:[%s302 + $0x58] sm:$0xff]
        %v2247 = vld [vmem:[%s302 + $0x60] sm:$0xff]
        %v2248 = vld [vmem:[%s302 + $0x68] sm:$0xff]
        %v2249 = vld [vmem:[%s302 + $0x70] sm:$0xff]
        %v2250 = vld [vmem:[%s302 + $0x78] sm:$0xff]
        %v2251 = vld [vmem:[%s302 + $0x80] sm:$0xff]
        %v2252 = vld [vmem:[%s302 + $0x88] sm:$0xff]
        %v2253 = vld [vmem:[%s302 + $0x90] sm:$0xff]
        %v2254 = vld [vmem:[%s302 + $0x98] sm:$0xff]
        %v2255 = vld [vmem:[%s302 + $0xa0] sm:$0xff]
        %v2256 = vld [vmem:[%s302 + $0xa8] sm:$0xff]
        %v2257 = vld [vmem:[%s302 + $0xb0] sm:$0xff]
        %v2258 = vld [vmem:[%s302 + $0xb8] sm:$0xff]
        %v2259 = vld [vmem:[%s302 + $0xc0] sm:$0xff]
        %v2260 = vld [vmem:[%s302 + $0xc8] sm:$0xff]
        %v2261 = vld [vmem:[%s302 + $0xd0] sm:$0xff]
        %v2262 = vld [vmem:[%s302 + $0xd8] sm:$0xff]
        %v2263 = vld [vmem:[%s302 + $0xe0] sm:$0xff]
        %v2264 = vld [vmem:[%s302 + $0xe8] sm:$0xff]
        %v2265 = vld [vmem:[%s302 + $0xf0] sm:$0xff]
        %v2266 = vld [vmem:[%s302 + $0xf8] sm:$0xff]
        %v2267 = vadd.f32 %v2235, %v2203
        %v2268 = vadd.f32 %v2236, %v2204
        %v2269 = vadd.f32 %v2237, %v2205
        %v2270 = vadd.f32 %v2238, %v2206
        %v2271 = vadd.f32 %v2239, %v2207
        %v2272 = vadd.f32 %v2240, %v2208
        %v2273 = vadd.f32 %v2241, %v2209
        %v2274 = vadd.f32 %v2242, %v2210
        %v2275 = vadd.f32 %v2243, %v2211
        %v2276 = vadd.f32 %v2244, %v2212
        %v2277 = vadd.f32 %v2245, %v2213
        %v2278 = vadd.f32 %v2246, %v2214
        %v2279 = vadd.f32 %v2247, %v2215
        %v2280 = vadd.f32 %v2248, %v2216
        %v2281 = vadd.f32 %v2249, %v2217
        %v2282 = vadd.f32 %v2250, %v2218
        %v2283 = vadd.f32 %v2251, %v2219
        %v2284 = vadd.f32 %v2252, %v2220
        %v2285 = vadd.f32 %v2253, %v2221
        %v2286 = vadd.f32 %v2254, %v2222
        %v2287 = vadd.f32 %v2255, %v2223
        %v2288 = vadd.f32 %v2256, %v2224
        %v2289 = vadd.f32 %v2257, %v2225
        %v2290 = vadd.f32 %v2258, %v2226
        %v2291 = vadd.f32 %v2259, %v2227
        %v2292 = vadd.f32 %v2260, %v2228
        %v2293 = vadd.f32 %v2261, %v2229
        %v2294 = vadd.f32 %v2262, %v2230
        %v2295 = vadd.f32 %v2263, %v2231
        %v2296 = vadd.f32 %v2264, %v2232
        %v2297 = vadd.f32 %v2265, %v2233
        %v2298 = vadd.f32 %v2266, %v2234
        %2299 = vst.msk [vmem:[%s348] sm:$0xff] %vm349, %v2267
        %2300 = vst.msk [vmem:[%s348 + $0x8] sm:$0xff] %vm349, %v2268
        %2301 = vst.msk [vmem:[%s348 + $0x10] sm:$0xff] %vm349, %v2269
        %2302 = vst.msk [vmem:[%s348 + $0x18] sm:$0xff] %vm349, %v2270
        %2303 = vst.msk [vmem:[%s348 + $0x20] sm:$0xff] %vm349, %v2271
        %2304 = vst.msk [vmem:[%s348 + $0x28] sm:$0xff] %vm349, %v2272
        %2305 = vst.msk [vmem:[%s348 + $0x30] sm:$0xff] %vm349, %v2273
        %2306 = vst.msk [vmem:[%s348 + $0x38] sm:$0xff] %vm349, %v2274
        %2307 = vst.msk [vmem:[%s348 + $0x40] sm:$0xff] %vm349, %v2275
        %2308 = vst.msk [vmem:[%s348 + $0x48] sm:$0xff] %vm349, %v2276
        %2309 = vst.msk [vmem:[%s348 + $0x50] sm:$0xff] %vm349, %v2277
        %2310 = vst.msk [vmem:[%s348 + $0x58] sm:$0xff] %vm349, %v2278
        %2311 = vst.msk [vmem:[%s348 + $0x60] sm:$0xff] %vm349, %v2279
        %2312 = vst.msk [vmem:[%s348 + $0x68] sm:$0xff] %vm349, %v2280
        %2313 = vst.msk [vmem:[%s348 + $0x70] sm:$0xff] %vm349, %v2281
        %2314 = vst.msk [vmem:[%s348 + $0x78] sm:$0xff] %vm349, %v2282
        %2315 = vst.msk [vmem:[%s348 + $0x80] sm:$0xff] %vm349, %v2283
        %2316 = vst.msk [vmem:[%s348 + $0x88] sm:$0xff] %vm349, %v2284
        %2317 = vst.msk [vmem:[%s348 + $0x90] sm:$0xff] %vm349, %v2285
        %2318 = vst.msk [vmem:[%s348 + $0x98] sm:$0xff] %vm349, %v2286
        %2319 = vst.msk [vmem:[%s348 + $0xa0] sm:$0xff] %vm349, %v2287
        %2320 = vst.msk [vmem:[%s348 + $0xa8] sm:$0xff] %vm349, %v2288
        %2321 = vst.msk [vmem:[%s348 + $0xb0] sm:$0xff] %vm349, %v2289
        %2322 = vst.msk [vmem:[%s348 + $0xb8] sm:$0xff] %vm349, %v2290
        %2323 = vst.msk [vmem:[%s348 + $0xc0] sm:$0xff] %vm349, %v2291
        %2324 = vst.msk [vmem:[%s348 + $0xc8] sm:$0xff] %vm349, %v2292
        %2325 = vst.msk [vmem:[%s348 + $0xd0] sm:$0xff] %vm349, %v2293
        %2326 = vst.msk [vmem:[%s348 + $0xd8] sm:$0xff] %vm349, %v2294
        %2327 = vst.msk [vmem:[%s348 + $0xe0] sm:$0xff] %vm349, %v2295
        %2328 = vst.msk [vmem:[%s348 + $0xe8] sm:$0xff] %vm349, %v2296
        %2329 = vst.msk [vmem:[%s348 + $0xf0] sm:$0xff] %vm349, %v2297
        %2330 = vst.msk [vmem:[%s348 + $0xf8] sm:$0xff] %vm349, %v2298
        %s2331 = sand.u32 %s186, 1
        %s2332 = scalar_lea.sflag [#allocation5], %s2331
        %s2333 = sand.u32 %s186, 1
        %s2334 = smul.addr %s2333, 256
        %s2335 = scalar_lea.vmem [#allocation11], %s2334
        // Predicated region
        $region65: #{tpu_custom_call.1} parent=47 // pred_check
          %p2336 = pneg %p196
        $region66: #{tpu_custom_call.1} parent=47 // pred_check_branch
          %2338 = sbr.rel (%p2336) target = $region68
        $region67: #{tpu_custom_call.1} parent=47 // pred_region
          %2340 = vsyncadd %s2332, 0
          %s2341 = smul.addr %s26, 32
          %s2342 = smul.addr %s2341, 8
          %s2343 = scalar_lea.hbm %s7, %s2342
          %s2344 = sshll.u32 %s2335, 4
          %s2345 = int_to_ptr.vmem [resolvable:$true] %s2344
          %s2346 = sshll.u32 %s2343, 4
          %s2347 = int_to_ptr.hbm [resolvable:$true] %s2346
          %2352 = dma.vmem_to_hbm [thread:$0]  %s2345, 4096, %s2347, %s2332, 128, 128, 8
        $region68: #{tpu_custom_call.1} parent=47 // pred_fallthru
          _
      $region48: #{tpu_custom_call.1} parent=5 // pred_fallthru
        _
      %p2353 = scmp.le.s32.totalorder 2, %s21
      // Predicated region
      $region69: #{tpu_custom_call.1} parent=5 // pred_check
        %p2354 = pneg %p2353
      $region70: #{tpu_custom_call.1} parent=5 // pred_check_branch
        %2356 = sbr.rel (%p2354) target = $region72
      $region71: #{tpu_custom_call.1} parent=5 // pred_region
        %s2357 = ssub.s32 %s21, 2
        // Predicated region
        $region73: #{tpu_custom_call.1} parent=71 // pred_check
          %p2358 = pneg %p202
        $region74: #{tpu_custom_call.1} parent=71 // pred_check_branch
          %2360 = sbr.rel (%p2358) target = $region76
        $region75: #{tpu_custom_call.1} parent=71 // pred_region
          %s2361 = sand.u32 %s187, 1
          %s2362 = scalar_lea.sflag [#allocation5], %s2361
          %s2363 = sand.u32 %s187, 1
          %s2364 = smul.addr %s2363, 256
          %s2365 = scalar_lea.vmem [#allocation11], %s2364
          %2367 = dma.done %s2362, 4096
        $region76: #{tpu_custom_call.1} parent=71 // pred_fallthru
          _
      $region72: #{tpu_custom_call.1} parent=5 // pred_fallthru
        _
    $region6: #{tpu_custom_call.1} parent=1 // loop_footer
      %s25 = sadd.s32 1, %s21
    $region7: #{tpu_custom_call.1} parent=1 // loop_footer_branch
      %20 = sbr.rel target = $region3
    $region8: #{tpu_custom_call.1} parent=1 // loop_exit
      _
    %2368 = vsyncpa [#allocation4], 1
    %s2369 = scalar_lea.sflag [#allocation4], 1
    %2370 = vsyncpa %s2369, 1
    %2371 = vsyncpa [#allocation7], 1
    %2372 = vsyncpa [#allocation10], 1
    %2373 = vsyncpa [#allocation5], 1
    %s2374 = scalar_lea.sflag [#allocation5], 1
    %2375 = vsyncpa %s2374, 1

</llo_original>
